<compile_context>
chip_gen: v7x
topology: tpu7x:2x2x1
jax: 0.10.0
libtpu: 0.0.40
codegen_flags: <defaults>
</compile_context>

<pallas_src>
from functools import partial

import numpy as np
import jax
import jax.numpy as jnp
from jax import lax
from jax.experimental import pallas as pl
from jax.experimental.pallas import tpu as pltpu


def _round_up(x, m):
    return ((x + m - 1) // m) * m


def _pad_gate_cols(w, H, H_pad):
    """(..., 4*H) -> (..., 4*H_pad): zero-pad each gate slice to H_pad lanes."""
    lead = w.shape[:-1]
    w4 = w.reshape(lead + (4, H))
    pad_width = [(0, 0)] * len(lead) + [(0, 0), (0, H_pad - H)]
    return jnp.pad(w4, pad_width).reshape(lead + (4 * H_pad,))


def _lstm_block_kernel(len_ref, gx_ref, whh_ref,
                       allh_ref, hf_ref, cf_ref,
                       h_scr, c_scr, *, time_block):
    """One block of `time_block` LSTM timesteps.  Grid axis 0 = time blocks."""
    blk = pl.program_id(0)

    @pl.when(blk == 0)
    def _init():
        h_scr[...] = jnp.zeros_like(h_scr)
        c_scr[...] = jnp.zeros_like(c_scr)

    H = h_scr.shape[-1]                 # padded hidden size (multiple of 128)
    lens = len_ref[...]                 # (B_pad, 1) int32 -- loaded once per block
    whh = whh_ref[...]                  # (H_pad, 4*H_pad) bf16 -- loaded once per block
    t0 = blk * time_block

    def step(s, carry):
        h_prev, c_prev = carry          # f32 (B_pad, H_pad) in vregs
        gates = gx_ref[s] + jnp.dot(h_prev.astype(whh.dtype), whh,
                                    preferred_element_type=jnp.float32)
        # sigmoid(x) == 0.5 * (tanh(0.5 * x) + 1): tanh-only EUP path.
        i_g = 0.5 * (jnp.tanh(0.5 * gates[:, 0 * H:1 * H]) + 1.0)
        f_g = 0.5 * (jnp.tanh(0.5 * gates[:, 1 * H:2 * H]) + 1.0)
        g_g = jnp.tanh(gates[:, 2 * H:3 * H])
        o_g = 0.5 * (jnp.tanh(0.5 * gates[:, 3 * H:4 * H]) + 1.0)

        c_upd = f_g * c_prev + i_g * g_g
        h_upd = o_g * jnp.tanh(c_upd)

        # Packed-sequence semantics: only sequences with length > t advance.
        active = (t0 + s) < lens        # (B_pad, 1) bool, broadcasts over H
        h_new = jnp.where(active, h_upd, h_prev)
        c_new = jnp.where(active, c_upd, c_prev)

        # all_hidden is zero-padded past each sequence's end.
        allh_ref[s] = jnp.where(active, h_upd, 0.0)
        return h_new, c_new

    h, c = lax.fori_loop(0, time_block, step, (h_scr[...], c_scr[...]),
                         unroll=True)
    h_scr[...] = h
    c_scr[...] = c

    # Final hidden/cell: resident output blocks, written once at the very end.
    @pl.when(blk == pl.num_programs(0) - 1)
    def _finalize():
        hf_ref[0] = h
        cf_ref[0] = c


@partial(jax.jit, static_argnames=("time_block",))
def _forward_padded(x_pad, lengths_pad, w_ih_bf, w_hh_bf, bias_pad, *, time_block):
    """Padded/aligned forward: x_pad (T_pad,B_pad,I), weights gate-padded, bf16."""
    T_pad, B_pad, _ = x_pad.shape
    H_pad = w_hh_bf.shape[0]

    # Hoisted input projection: one large MXU matmul (bias folded in), computed
    # by XLA outside the serial recurrence (megacore-parallel on v6e/v7x).
    gates_x = jnp.einsum("tbi,ij->tbj", x_pad.astype(jnp.bfloat16), w_ih_bf,
                         preferred_element_type=jnp.float32) + bias_pad

    grid = (T_pad // time_block,)
    return pl.pallas_call(
        partial(_lstm_block_kernel, time_block=time_block),
        out_shape=(jax.ShapeDtypeStruct((T_pad, B_pad, H_pad), jnp.float32),
                   jax.ShapeDtypeStruct((1, B_pad, H_pad), jnp.float32),
                   jax.ShapeDtypeStruct((1, B_pad, H_pad), jnp.float32)),
        grid_spec=pltpu.PrefetchScalarGridSpec(
            num_scalar_prefetch=0,
            grid=grid,
            in_specs=[
                pl.BlockSpec((B_pad, 1), lambda b: (0, 0)),          # sequence lengths
                pl.BlockSpec((time_block, B_pad, 4 * H_pad),
                             lambda b: (b, 0, 0)),                   # precomputed x-gates
                # Grid-invariant recurrent weights (constant index_map => fetched once).
                # TODO(synk): on v7x at production H, also set pipeline_mode=pl.Buffered(1)
                # and vmem_limit_bytes so the bf16 W_hh is single-buffered in 64 MiB VMEM.
                pl.BlockSpec((H_pad, 4 * H_pad), lambda b: (0, 0)),  # W_hh (bf16)
            ],
            out_specs=[
                pl.BlockSpec((time_block, B_pad, H_pad), lambda b: (b, 0, 0)),  # all_hidden
                pl.BlockSpec((1, B_pad, H_pad), lambda b: (0, 0, 0)),           # final h
                pl.BlockSpec((1, B_pad, H_pad), lambda b: (0, 0, 0)),           # final c
            ],
            scratch_shapes=[pltpu.VMEM((B_pad, H_pad), jnp.float32),   # h carry
                            pltpu.VMEM((B_pad, H_pad), jnp.float32)],  # c carry
        ),
        compiler_params=pltpu.CompilerParams(
            dimension_semantics=("arbitrary",)),      # time recurrence is sequential
    )(lengths_pad.reshape(B_pad, 1), gates_x, w_hh_bf)


def attention_lstm_forward(sequence_batch, w_ih, w_hh, bias, *, time_block=8):
    """Mirrors AttentionLSTM.forward(sequence_batch, hidden=None, attended=None).

    sequence_batch: list of float32 arrays of shape (L_i, I).
    Returns ((all_hidden (T,B,H), sequence_lengths (B,)),
             (h_final (1,B,H), c_final (1,B,H))).
    """
    B = len(sequence_batch)
    lengths_list = [int(s.shape[0]) for s in sequence_batch]
    lengths = jnp.asarray(lengths_list, dtype=jnp.int32)
    T = max(lengths_list)
    I = int(sequence_batch[0].shape[1])
    H = int(w_hh.shape[0])

    B_pad = max(8, _round_up(B, 8))          # sublane padding
    H_pad = max(128, _round_up(H, 128))      # lane padding (gate-aligned)
    T_pad = _round_up(T, time_block)

    # Pad the list of sequences into a (T_pad, B_pad, I) tensor (glue, host side).
    x_np = np.zeros((T_pad, B_pad, I), np.float32)
    for b, s in enumerate(sequence_batch):
        x_np[:lengths_list[b], b, :] = np.asarray(s, np.float32)
    x_pad = jnp.asarray(x_np)

    len_np = np.zeros((B_pad,), np.int32)
    len_np[:B] = lengths_list
    lengths_pad = jnp.asarray(len_np)

    # Gate-aligned, zero-padded weights; bf16 for the MXU, bias kept f32.
    w_ih_p = _pad_gate_cols(jnp.asarray(w_ih, jnp.float32), H, H_pad)        # (I, 4*H_pad)
    w_hh_p = _pad_gate_cols(jnp.asarray(w_hh, jnp.float32), H, H_pad)        # (H, 4*H_pad)
    w_hh_p = jnp.pad(w_hh_p, ((0, H_pad - H), (0, 0)))                       # (H_pad, 4*H_pad)
    bias_p = _pad_gate_cols(jnp.asarray(bias, jnp.float32).reshape(1, 4 * H),
                            H, H_pad)                                        # (1, 4*H_pad)

    all_h, h_f, c_f = _forward_padded(
        x_pad, lengths_pad,
        w_ih_p.astype(jnp.bfloat16), w_hh_p.astype(jnp.bfloat16), bias_p,
        time_block=time_block)

    # Strip the batch/hidden/time padding.
    all_hidden = all_h[:T, :B, :H]
    h_final = h_f[:, :B, :H]
    c_final = c_f[:, :B, :H]
    return (all_hidden, lengths), (h_final, c_final)


def _reference_forward(x, lengths, w_ih, w_hh, bias):
    """Pure-JAX f32 reference of the packed-LSTM semantics (for validation)."""
    T, B, _ = x.shape
    H = w_hh.shape[0]
    h = jnp.zeros((B, H), jnp.float32)
    c = jnp.zeros((B, H), jnp.float32)
    all_h = []
    for t in range(T):
        gates = x[t] @ w_ih + h @ w_hh + bias
        i = jax.nn.sigmoid(gates[:, :H])
        f = jax.nn.sigmoid(gates[:, H:2 * H])
        g = jnp.tanh(gates[:, 2 * H:3 * H])
        o = jax.nn.sigmoid(gates[:, 3 * H:])
        c_u = f * c + i * g
        h_u = o * jnp.tanh(c_u)
        active = (t < lengths)[:, None]
        h = jnp.where(active, h_u, h)
        c = jnp.where(active, c_u, c)
        all_h.append(jnp.where(active, h_u, 0.0))
    return jnp.stack(all_h, 0), h[None], c[None]


if __name__ == "__main__":
    key = jax.random.PRNGKey(0)
    I, H = 16, 32                       # input_size, hidden_size
    seq_lens = [8, 5, 3]                # variable-length batch, B = 3
    B = len(seq_lens)

    # Deterministic parameter init, mirroring LSTMAdapter.__init__:
    # xavier_normal_ for weights, zeros for biases.  (Stored transposed.)
    k1, k2, k3 = jax.random.split(key, 3)
    std_ih = (2.0 / (4 * H + I)) ** 0.5
    std_hh = (2.0 / (4 * H + H)) ** 0.5
    w_ih = std_ih * jax.random.normal(k1, (I, 4 * H), jnp.float32)
    w_hh = std_hh * jax.random.normal(k2, (H, 4 * H), jnp.float32)
    bias = jnp.zeros((1, 4 * H), jnp.float32)

    # Build the list of variable-length input sequences.
    seq_keys = jax.random.split(k3, B)
    sequence_batch = [jax.random.normal(sk, (L, I), jnp.float32)
                      for sk, L in zip(seq_keys, seq_lens)]

    # time_block=4 -> two time blocks, exercising the cross-block h/c carry.
    (all_hidden, lengths), (h_final, c_final) = attention_lstm_forward(
        sequence_batch, w_ih, w_hh, bias, time_block=4)
    jax.block_until_ready((all_hidden, h_final, c_final))

    # Validate against a pure-JAX f32 reference of the same semantics
    # (tolerance covers the bf16 matmul operands used in the kernel path).
    T = max(seq_lens)
    x_ref = jnp.zeros((T, B, I), jnp.float32)
    for b, s in enumerate(sequence_batch):
        x_ref = x_ref.at[:s.shape[0], b, :].set(s)
    ref_all, ref_h, ref_c = _reference_forward(
        x_ref, jnp.array(seq_lens, jnp.int32), w_ih, w_hh, bias)

    assert all_hidden.shape == (T, B, H)
    assert h_final.shape == (1, B, H) and c_final.shape == (1, B, H)
    assert jnp.allclose(all_hidden, ref_all, atol=2e-2, rtol=2e-2)
    assert jnp.allclose(h_final, ref_h, atol=2e-2, rtol=2e-2)
    assert jnp.allclose(c_final, ref_c, atol=2e-2, rtol=2e-2)

    print("KERNEL_OK")
</pallas_src>

<mosaic_0001>
module attributes {stable_mosaic.version = 11 : i64} {
  func.func @_lstm_block_kernel(%arg0: i32, %arg1: memref<8x1xi32, #tpu.memory_space<vmem>>, %arg2: memref<4x8x512xf32, #tpu.memory_space<vmem>>, %arg3: memref<128x512xbf16, #tpu.memory_space<vmem>>, %arg4: memref<4x8x128xf32, #tpu.memory_space<vmem>>, %arg5: memref<1x8x128xf32, #tpu.memory_space<vmem>>, %arg6: memref<1x8x128xf32, #tpu.memory_space<vmem>>, %arg7: memref<8x128xf32, #tpu.memory_space<vmem>>, %arg8: memref<8x128xf32, #tpu.memory_space<vmem>>) attributes {dimension_semantics = [#tpu.dimension_semantics<arbitrary>], iteration_bounds = array<i64: 2>, scalar_prefetch = 0 : i64, scratch_operands = 2 : i64, tpu.core_type = #tpu.core_type<tc>, window_params = [{pipeline_mode = #tpu.pipeline_mode<synchronous>, transform_indices = @transform_0, window_bounds = array<i64: 8, 1>}, {transform_indices = @transform_1, window_bounds = array<i64: 4, 8, 512>}, {pipeline_mode = #tpu.pipeline_mode<synchronous>, transform_indices = @transform_2, window_bounds = array<i64: 128, 512>}, {transform_indices = @transform_3, window_bounds = array<i64: 4, 8, 128>}, {pipeline_mode = #tpu.pipeline_mode<synchronous>, transform_indices = @transform_4, window_bounds = array<i64: 1, 8, 128>}, {pipeline_mode = #tpu.pipeline_mode<synchronous>, transform_indices = @transform_5, window_bounds = array<i64: 1, 8, 128>}]} {
    %c0_i32 = arith.constant 0 : i32
    %0 = arith.cmpi eq, %arg0, %c0_i32 : i32
    %1 = arith.extui %0 : i1 to i32
    %c0_i32_0 = arith.constant 0 : i32
    %2 = arith.cmpi ne, %1, %c0_i32_0 : i32
    scf.if %2 {
      %cst_75 = arith.constant 0.000000e+00 : f32
      %229 = vector.broadcast %cst_75 : f32 to vector<8x128xf32>
      %c0_76 = arith.constant 0 : index
      %c0_77 = arith.constant 0 : index
      %230 = vector.load %arg7[%c0_76, %c0_77] : memref<8x128xf32, #tpu.memory_space<vmem>>, vector<8x128xf32>
      tpu.vector_store %arg7[%c0_76, %c0_77], %229 {strides = array<i32>} : memref<8x128xf32, #tpu.memory_space<vmem>>, vector<8x128xf32>,
      %cst_78 = arith.constant 0.000000e+00 : f32
      %231 = vector.broadcast %cst_78 : f32 to vector<8x128xf32>
      %c0_79 = arith.constant 0 : index
      %c0_80 = arith.constant 0 : index
      %232 = vector.load %arg8[%c0_79, %c0_80] : memref<8x128xf32, #tpu.memory_space<vmem>>, vector<8x128xf32>
      tpu.vector_store %arg8[%c0_79, %c0_80], %231 {strides = array<i32>} : memref<8x128xf32, #tpu.memory_space<vmem>>, vector<8x128xf32>,
    } else {
    }
    %c0 = arith.constant 0 : index
    %c0_1 = arith.constant 0 : index
    %3 = vector.load %arg1[%c0, %c0_1] : memref<8x1xi32, #tpu.memory_space<vmem>>, vector<8x1xi32>
    %c0_2 = arith.constant 0 : index
    %c0_3 = arith.constant 0 : index
    %4 = vector.load %arg3[%c0_2, %c0_3] : memref<128x512xbf16, #tpu.memory_space<vmem>>, vector<128x512xbf16>
    %c4_i32 = arith.constant 4 : i32
    %5 = arith.muli %arg0, %c4_i32 : i32
    %c0_4 = arith.constant 0 : index
    %c0_5 = arith.constant 0 : index
    %6 = vector.load %arg7[%c0_4, %c0_5] : memref<8x128xf32, #tpu.memory_space<vmem>>, vector<8x128xf32>
    %c0_6 = arith.constant 0 : index
    %c0_7 = arith.constant 0 : index
    %7 = vector.load %arg8[%c0_6, %c0_7] : memref<8x128xf32, #tpu.memory_space<vmem>>, vector<8x128xf32>
    %c0_i32_8 = arith.constant 0 : i32
    %8 = arith.index_cast %c0_i32_8 : i32 to index
    %c0_9 = arith.constant 0 : index
    %c0_10 = arith.constant 0 : index
    %9 = vector.load %arg2[%8, %c0_9, %c0_10] : memref<4x8x512xf32, #tpu.memory_space<vmem>>, vector<1x8x512xf32>
    %10 = vector.shape_cast %9 : vector<1x8x512xf32> to vector<8x512xf32>
    %11 = arith.truncf %6 : vector<8x128xf32> to vector<8x128xbf16>
    %cst = arith.constant dense<0.000000e+00> : vector<8x512xf32>
    %12 = tpu.matmul %11, %4, %cst {dimension_numbers = #tpu.dot_dimension_numbers<[1], [0], [0], [1], [0, 0, 1, 1], [], []>} : vector<8x128xbf16>, vector<128x512xbf16>, vector<8x512xf32> -> vector<8x512xf32>
    %13 = arith.addf %10, %12 : vector<8x512xf32>
    %14 = vector.extract_strided_slice %13 {offsets = [0, 0], sizes = [8, 128], strides = [1, 1]} : vector<8x512xf32> to vector<8x128xf32>
    %cst_11 = arith.constant 5.000000e-01 : f32
    %15 = vector.broadcast %cst_11 : f32 to vector<8x128xf32>
    %16 = arith.mulf %15, %14 : vector<8x128xf32>
    %17 = math.tanh %16 : vector<8x128xf32>
    %cst_12 = arith.constant 1.000000e+00 : f32
    %18 = vector.broadcast %cst_12 : f32 to vector<8x128xf32>
    %19 = arith.addf %17, %18 : vector<8x128xf32>
    %cst_13 = arith.constant 5.000000e-01 : f32
    %20 = vector.broadcast %cst_13 : f32 to vector<8x128xf32>
    %21 = arith.mulf %20, %19 : vector<8x128xf32>
    %22 = vector.extract_strided_slice %13 {offsets = [0, 128], sizes = [8, 128], strides = [1, 1]} : vector<8x512xf32> to vector<8x128xf32>
    %cst_14 = arith.constant 5.000000e-01 : f32
    %23 = vector.broadcast %cst_14 : f32 to vector<8x128xf32>
    %24 = arith.mulf %23, %22 : vector<8x128xf32>
    %25 = math.tanh %24 : vector<8x128xf32>
    %cst_15 = arith.constant 1.000000e+00 : f32
    %26 = vector.broadcast %cst_15 : f32 to vector<8x128xf32>
    %27 = arith.addf %25, %26 : vector<8x128xf32>
    %cst_16 = arith.constant 5.000000e-01 : f32
    %28 = vector.broadcast %cst_16 : f32 to vector<8x128xf32>
    %29 = arith.mulf %28, %27 : vector<8x128xf32>
    %30 = vector.extract_strided_slice %13 {offsets = [0, 256], sizes = [8, 128], strides = [1, 1]} : vector<8x512xf32> to vector<8x128xf32>
    %31 = math.tanh %30 : vector<8x128xf32>
    %32 = vector.extract_strided_slice %13 {offsets = [0, 384], sizes = [8, 128], strides = [1, 1]} : vector<8x512xf32> to vector<8x128xf32>
    %cst_17 = arith.constant 5.000000e-01 : f32
    %33 = vector.broadcast %cst_17 : f32 to vector<8x128xf32>
    %34 = arith.mulf %33, %32 : vector<8x128xf32>
    %35 = math.tanh %34 : vector<8x128xf32>
    %cst_18 = arith.constant 1.000000e+00 : f32
    %36 = vector.broadcast %cst_18 : f32 to vector<8x128xf32>
    %37 = arith.addf %35, %36 : vector<8x128xf32>
    %cst_19 = arith.constant 5.000000e-01 : f32
    %38 = vector.broadcast %cst_19 : f32 to vector<8x128xf32>
    %39 = arith.mulf %38, %37 : vector<8x128xf32>
    %40 = arith.mulf %29, %7 : vector<8x128xf32>
    %41 = arith.mulf %21, %31 : vector<8x128xf32>
    %42 = arith.addf %40, %41 : vector<8x128xf32>
    %43 = math.tanh %42 : vector<8x128xf32>
    %44 = arith.mulf %39, %43 : vector<8x128xf32>
    %45 = arith.addi %5, %c0_i32_8 : i32
    %46 = vector.broadcast %45 : i32 to vector<8x1xi32>
    %47 = arith.cmpi slt, %46, %3 : vector<8x1xi32>
    %48 = vector.shape_cast %47 : vector<8x1xi1> to vector<8x1xi1>
    %49 = vector.broadcast %48 : vector<8x1xi1> to vector<8x128xi1>
    %50 = arith.select %49, %44, %6 : vector<8x128xi1>, vector<8x128xf32>
    %51 = vector.shape_cast %47 : vector<8x1xi1> to vector<8x1xi1>
    %52 = vector.broadcast %51 : vector<8x1xi1> to vector<8x128xi1>
    %53 = arith.select %52, %42, %7 : vector<8x128xi1>, vector<8x128xf32>
    %cst_20 = arith.constant 0.000000e+00 : f32
    %54 = vector.shape_cast %47 : vector<8x1xi1> to vector<8x1xi1>
    %55 = vector.broadcast %54 : vector<8x1xi1> to vector<8x128xi1>
    %56 = vector.broadcast %cst_20 : f32 to vector<8x128xf32>
    %57 = arith.select %55, %44, %56 : vector<8x128xi1>, vector<8x128xf32>
    %58 = arith.index_cast %c0_i32_8 : i32 to index
    %c0_21 = arith.constant 0 : index
    %c0_22 = arith.constant 0 : index
    %59 = vector.load %arg4[%58, %c0_21, %c0_22] : memref<4x8x128xf32, #tpu.memory_space<vmem>>, vector<1x8x128xf32>
    %60 = vector.shape_cast %59 : vector<1x8x128xf32> to vector<8x128xf32>
    %61 = vector.shape_cast %57 : vector<8x128xf32> to vector<1x8x128xf32>
    tpu.vector_store %arg4[%58, %c0_21, %c0_22], %61 {strides = array<i32>} : memref<4x8x128xf32, #tpu.memory_space<vmem>>, vector<1x8x128xf32>,
    %c1_i32 = arith.constant 1 : i32
    %62 = arith.index_cast %c1_i32 : i32 to index
    %c0_23 = arith.constant 0 : index
    %c0_24 = arith.constant 0 : index
    %63 = vector.load %arg2[%62, %c0_23, %c0_24] : memref<4x8x512xf32, #tpu.memory_space<vmem>>, vector<1x8x512xf32>
    %64 = vector.shape_cast %63 : vector<1x8x512xf32> to vector<8x512xf32>
    %65 = arith.truncf %50 : vector<8x128xf32> to vector<8x128xbf16>
    %cst_25 = arith.constant dense<0.000000e+00> : vector<8x512xf32>
    %66 = tpu.matmul %65, %4, %cst_25 {dimension_numbers = #tpu.dot_dimension_numbers<[1], [0], [0], [1], [0, 0, 1, 1], [], []>} : vector<8x128xbf16>, vector<128x512xbf16>, vector<8x512xf32> -> vector<8x512xf32>
    %67 = arith.addf %64, %66 : vector<8x512xf32>
    %68 = vector.extract_strided_slice %67 {offsets = [0, 0], sizes = [8, 128], strides = [1, 1]} : vector<8x512xf32> to vector<8x128xf32>
    %cst_26 = arith.constant 5.000000e-01 : f32
    %69 = vector.broadcast %cst_26 : f32 to vector<8x128xf32>
    %70 = arith.mulf %69, %68 : vector<8x128xf32>
    %71 = math.tanh %70 : vector<8x128xf32>
    %cst_27 = arith.constant 1.000000e+00 : f32
    %72 = vector.broadcast %cst_27 : f32 to vector<8x128xf32>
    %73 = arith.addf %71, %72 : vector<8x128xf32>
    %cst_28 = arith.constant 5.000000e-01 : f32
    %74 = vector.broadcast %cst_28 : f32 to vector<8x128xf32>
    %75 = arith.mulf %74, %73 : vector<8x128xf32>
    %76 = vector.extract_strided_slice %67 {offsets = [0, 128], sizes = [8, 128], strides = [1, 1]} : vector<8x512xf32> to vector<8x128xf32>
    %cst_29 = arith.constant 5.000000e-01 : f32
    %77 = vector.broadcast %cst_29 : f32 to vector<8x128xf32>
    %78 = arith.mulf %77, %76 : vector<8x128xf32>
    %79 = math.tanh %78 : vector<8x128xf32>
    %cst_30 = arith.constant 1.000000e+00 : f32
    %80 = vector.broadcast %cst_30 : f32 to vector<8x128xf32>
    %81 = arith.addf %79, %80 : vector<8x128xf32>
    %cst_31 = arith.constant 5.000000e-01 : f32
    %82 = vector.broadcast %cst_31 : f32 to vector<8x128xf32>
    %83 = arith.mulf %82, %81 : vector<8x128xf32>
    %84 = vector.extract_strided_slice %67 {offsets = [0, 256], sizes = [8, 128], strides = [1, 1]} : vector<8x512xf32> to vector<8x128xf32>
    %85 = math.tanh %84 : vector<8x128xf32>
    %86 = vector.extract_strided_slice %67 {offsets = [0, 384], sizes = [8, 128], strides = [1, 1]} : vector<8x512xf32> to vector<8x128xf32>
    %cst_32 = arith.constant 5.000000e-01 : f32
    %87 = vector.broadcast %cst_32 : f32 to vector<8x128xf32>
    %88 = arith.mulf %87, %86 : vector<8x128xf32>
    %89 = math.tanh %88 : vector<8x128xf32>
    %cst_33 = arith.constant 1.000000e+00 : f32
    %90 = vector.broadcast %cst_33 : f32 to vector<8x128xf32>
    %91 = arith.addf %89, %90 : vector<8x128xf32>
    %cst_34 = arith.constant 5.000000e-01 : f32
    %92 = vector.broadcast %cst_34 : f32 to vector<8x128xf32>
    %93 = arith.mulf %92, %91 : vector<8x128xf32>
    %94 = arith.mulf %83, %53 : vector<8x128xf32>
    %95 = arith.mulf %75, %85 : vector<8x128xf32>
    %96 = arith.addf %94, %95 : vector<8x128xf32>
    %97 = math.tanh %96 : vector<8x128xf32>
    %98 = arith.mulf %93, %97 : vector<8x128xf32>
    %99 = arith.addi %5, %c1_i32 : i32
    %100 = vector.broadcast %99 : i32 to vector<8x1xi32>
    %101 = arith.cmpi slt, %100, %3 : vector<8x1xi32>
    %102 = vector.shape_cast %101 : vector<8x1xi1> to vector<8x1xi1>
    %103 = vector.broadcast %102 : vector<8x1xi1> to vector<8x128xi1>
    %104 = arith.select %103, %98, %50 : vector<8x128xi1>, vector<8x128xf32>
    %105 = vector.shape_cast %101 : vector<8x1xi1> to vector<8x1xi1>
    %106 = vector.broadcast %105 : vector<8x1xi1> to vector<8x128xi1>
    %107 = arith.select %106, %96, %53 : vector<8x128xi1>, vector<8x128xf32>
    %cst_35 = arith.constant 0.000000e+00 : f32
    %108 = vector.shape_cast %101 : vector<8x1xi1> to vector<8x1xi1>
    %109 = vector.broadcast %108 : vector<8x1xi1> to vector<8x128xi1>
    %110 = vector.broadcast %cst_35 : f32 to vector<8x128xf32>
    %111 = arith.select %109, %98, %110 : vector<8x128xi1>, vector<8x128xf32>
    %112 = arith.index_cast %c1_i32 : i32 to index
    %c0_36 = arith.constant 0 : index
    %c0_37 = arith.constant 0 : index
    %113 = vector.load %arg4[%112, %c0_36, %c0_37] : memref<4x8x128xf32, #tpu.memory_space<vmem>>, vector<1x8x128xf32>
    %114 = vector.shape_cast %113 : vector<1x8x128xf32> to vector<8x128xf32>
    %115 = vector.shape_cast %111 : vector<8x128xf32> to vector<1x8x128xf32>
    tpu.vector_store %arg4[%112, %c0_36, %c0_37], %115 {strides = array<i32>} : memref<4x8x128xf32, #tpu.memory_space<vmem>>, vector<1x8x128xf32>,
    %c2_i32 = arith.constant 2 : i32
    %116 = arith.index_cast %c2_i32 : i32 to index
    %c0_38 = arith.constant 0 : index
    %c0_39 = arith.constant 0 : index
    %117 = vector.load %arg2[%116, %c0_38, %c0_39] : memref<4x8x512xf32, #tpu.memory_space<vmem>>, vector<1x8x512xf32>
    %118 = vector.shape_cast %117 : vector<1x8x512xf32> to vector<8x512xf32>
    %119 = arith.truncf %104 : vector<8x128xf32> to vector<8x128xbf16>
    %cst_40 = arith.constant dense<0.000000e+00> : vector<8x512xf32>
    %120 = tpu.matmul %119, %4, %cst_40 {dimension_numbers = #tpu.dot_dimension_numbers<[1], [0], [0], [1], [0, 0, 1, 1], [], []>} : vector<8x128xbf16>, vector<128x512xbf16>, vector<8x512xf32> -> vector<8x512xf32>
    %121 = arith.addf %118, %120 : vector<8x512xf32>
    %122 = vector.extract_strided_slice %121 {offsets = [0, 0], sizes = [8, 128], strides = [1, 1]} : vector<8x512xf32> to vector<8x128xf32>
    %cst_41 = arith.constant 5.000000e-01 : f32
    %123 = vector.broadcast %cst_41 : f32 to vector<8x128xf32>
    %124 = arith.mulf %123, %122 : vector<8x128xf32>
    %125 = math.tanh %124 : vector<8x128xf32>
    %cst_42 = arith.constant 1.000000e+00 : f32
    %126 = vector.broadcast %cst_42 : f32 to vector<8x128xf32>
    %127 = arith.addf %125, %126 : vector<8x128xf32>
    %cst_43 = arith.constant 5.000000e-01 : f32
    %128 = vector.broadcast %cst_43 : f32 to vector<8x128xf32>
    %129 = arith.mulf %128, %127 : vector<8x128xf32>
    %130 = vector.extract_strided_slice %121 {offsets = [0, 128], sizes = [8, 128], strides = [1, 1]} : vector<8x512xf32> to vector<8x128xf32>
    %cst_44 = arith.constant 5.000000e-01 : f32
    %131 = vector.broadcast %cst_44 : f32 to vector<8x128xf32>
    %132 = arith.mulf %131, %130 : vector<8x128xf32>
    %133 = math.tanh %132 : vector<8x128xf32>
    %cst_45 = arith.constant 1.000000e+00 : f32
    %134 = vector.broadcast %cst_45 : f32 to vector<8x128xf32>
    %135 = arith.addf %133, %134 : vector<8x128xf32>
    %cst_46 = arith.constant 5.000000e-01 : f32
    %136 = vector.broadcast %cst_46 : f32 to vector<8x128xf32>
    %137 = arith.mulf %136, %135 : vector<8x128xf32>
    %138 = vector.extract_strided_slice %121 {offsets = [0, 256], sizes = [8, 128], strides = [1, 1]} : vector<8x512xf32> to vector<8x128xf32>
    %139 = math.tanh %138 : vector<8x128xf32>
    %140 = vector.extract_strided_slice %121 {offsets = [0, 384], sizes = [8, 128], strides = [1, 1]} : vector<8x512xf32> to vector<8x128xf32>
    %cst_47 = arith.constant 5.000000e-01 : f32
    %141 = vector.broadcast %cst_47 : f32 to vector<8x128xf32>
    %142 = arith.mulf %141, %140 : vector<8x128xf32>
    %143 = math.tanh %142 : vector<8x128xf32>
    %cst_48 = arith.constant 1.000000e+00 : f32
    %144 = vector.broadcast %cst_48 : f32 to vector<8x128xf32>
    %145 = arith.addf %143, %144 : vector<8x128xf32>
    %cst_49 = arith.constant 5.000000e-01 : f32
    %146 = vector.broadcast %cst_49 : f32 to vector<8x128xf32>
    %147 = arith.mulf %146, %145 : vector<8x128xf32>
    %148 = arith.mulf %137, %107 : vector<8x128xf32>
    %149 = arith.mulf %129, %139 : vector<8x128xf32>
    %150 = arith.addf %148, %149 : vector<8x128xf32>
    %151 = math.tanh %150 : vector<8x128xf32>
    %152 = arith.mulf %147, %151 : vector<8x128xf32>
    %153 = arith.addi %5, %c2_i32 : i32
    %154 = vector.broadcast %153 : i32 to vector<8x1xi32>
    %155 = arith.cmpi slt, %154, %3 : vector<8x1xi32>
    %156 = vector.shape_cast %155 : vector<8x1xi1> to vector<8x1xi1>
    %157 = vector.broadcast %156 : vector<8x1xi1> to vector<8x128xi1>
    %158 = arith.select %157, %152, %104 : vector<8x128xi1>, vector<8x128xf32>
    %159 = vector.shape_cast %155 : vector<8x1xi1> to vector<8x1xi1>
    %160 = vector.broadcast %159 : vector<8x1xi1> to vector<8x128xi1>
    %161 = arith.select %160, %150, %107 : vector<8x128xi1>, vector<8x128xf32>
    %cst_50 = arith.constant 0.000000e+00 : f32
    %162 = vector.shape_cast %155 : vector<8x1xi1> to vector<8x1xi1>
    %163 = vector.broadcast %162 : vector<8x1xi1> to vector<8x128xi1>
    %164 = vector.broadcast %cst_50 : f32 to vector<8x128xf32>
    %165 = arith.select %163, %152, %164 : vector<8x128xi1>, vector<8x128xf32>
    %166 = arith.index_cast %c2_i32 : i32 to index
    %c0_51 = arith.constant 0 : index
    %c0_52 = arith.constant 0 : index
    %167 = vector.load %arg4[%166, %c0_51, %c0_52] : memref<4x8x128xf32, #tpu.memory_space<vmem>>, vector<1x8x128xf32>
    %168 = vector.shape_cast %167 : vector<1x8x128xf32> to vector<8x128xf32>
    %169 = vector.shape_cast %165 : vector<8x128xf32> to vector<1x8x128xf32>
    tpu.vector_store %arg4[%166, %c0_51, %c0_52], %169 {strides = array<i32>} : memref<4x8x128xf32, #tpu.memory_space<vmem>>, vector<1x8x128xf32>,
    %c3_i32 = arith.constant 3 : i32
    %170 = arith.index_cast %c3_i32 : i32 to index
    %c0_53 = arith.constant 0 : index
    %c0_54 = arith.constant 0 : index
    %171 = vector.load %arg2[%170, %c0_53, %c0_54] : memref<4x8x512xf32, #tpu.memory_space<vmem>>, vector<1x8x512xf32>
    %172 = vector.shape_cast %171 : vector<1x8x512xf32> to vector<8x512xf32>
    %173 = arith.truncf %158 : vector<8x128xf32> to vector<8x128xbf16>
    %cst_55 = arith.constant dense<0.000000e+00> : vector<8x512xf32>
    %174 = tpu.matmul %173, %4, %cst_55 {dimension_numbers = #tpu.dot_dimension_numbers<[1], [0], [0], [1], [0, 0, 1, 1], [], []>} : vector<8x128xbf16>, vector<128x512xbf16>, vector<8x512xf32> -> vector<8x512xf32>
    %175 = arith.addf %172, %174 : vector<8x512xf32>
    %176 = vector.extract_strided_slice %175 {offsets = [0, 0], sizes = [8, 128], strides = [1, 1]} : vector<8x512xf32> to vector<8x128xf32>
    %cst_56 = arith.constant 5.000000e-01 : f32
    %177 = vector.broadcast %cst_56 : f32 to vector<8x128xf32>
    %178 = arith.mulf %177, %176 : vector<8x128xf32>
    %179 = math.tanh %178 : vector<8x128xf32>
    %cst_57 = arith.constant 1.000000e+00 : f32
    %180 = vector.broadcast %cst_57 : f32 to vector<8x128xf32>
    %181 = arith.addf %179, %180 : vector<8x128xf32>
    %cst_58 = arith.constant 5.000000e-01 : f32
    %182 = vector.broadcast %cst_58 : f32 to vector<8x128xf32>
    %183 = arith.mulf %182, %181 : vector<8x128xf32>
    %184 = vector.extract_strided_slice %175 {offsets = [0, 128], sizes = [8, 128], strides = [1, 1]} : vector<8x512xf32> to vector<8x128xf32>
    %cst_59 = arith.constant 5.000000e-01 : f32
    %185 = vector.broadcast %cst_59 : f32 to vector<8x128xf32>
    %186 = arith.mulf %185, %184 : vector<8x128xf32>
    %187 = math.tanh %186 : vector<8x128xf32>
    %cst_60 = arith.constant 1.000000e+00 : f32
    %188 = vector.broadcast %cst_60 : f32 to vector<8x128xf32>
    %189 = arith.addf %187, %188 : vector<8x128xf32>
    %cst_61 = arith.constant 5.000000e-01 : f32
    %190 = vector.broadcast %cst_61 : f32 to vector<8x128xf32>
    %191 = arith.mulf %190, %189 : vector<8x128xf32>
    %192 = vector.extract_strided_slice %175 {offsets = [0, 256], sizes = [8, 128], strides = [1, 1]} : vector<8x512xf32> to vector<8x128xf32>
    %193 = math.tanh %192 : vector<8x128xf32>
    %194 = vector.extract_strided_slice %175 {offsets = [0, 384], sizes = [8, 128], strides = [1, 1]} : vector<8x512xf32> to vector<8x128xf32>
    %cst_62 = arith.constant 5.000000e-01 : f32
    %195 = vector.broadcast %cst_62 : f32 to vector<8x128xf32>
    %196 = arith.mulf %195, %194 : vector<8x128xf32>
    %197 = math.tanh %196 : vector<8x128xf32>
    %cst_63 = arith.constant 1.000000e+00 : f32
    %198 = vector.broadcast %cst_63 : f32 to vector<8x128xf32>
    %199 = arith.addf %197, %198 : vector<8x128xf32>
    %cst_64 = arith.constant 5.000000e-01 : f32
    %200 = vector.broadcast %cst_64 : f32 to vector<8x128xf32>
    %201 = arith.mulf %200, %199 : vector<8x128xf32>
    %202 = arith.mulf %191, %161 : vector<8x128xf32>
    %203 = arith.mulf %183, %193 : vector<8x128xf32>
    %204 = arith.addf %202, %203 : vector<8x128xf32>
    %205 = math.tanh %204 : vector<8x128xf32>
    %206 = arith.mulf %201, %205 : vector<8x128xf32>
    %207 = arith.addi %5, %c3_i32 : i32
    %208 = vector.broadcast %207 : i32 to vector<8x1xi32>
    %209 = arith.cmpi slt, %208, %3 : vector<8x1xi32>
    %210 = vector.shape_cast %209 : vector<8x1xi1> to vector<8x1xi1>
    %211 = vector.broadcast %210 : vector<8x1xi1> to vector<8x128xi1>
    %212 = arith.select %211, %206, %158 : vector<8x128xi1>, vector<8x128xf32>
    %213 = vector.shape_cast %209 : vector<8x1xi1> to vector<8x1xi1>
    %214 = vector.broadcast %213 : vector<8x1xi1> to vector<8x128xi1>
    %215 = arith.select %214, %204, %161 : vector<8x128xi1>, vector<8x128xf32>
    %cst_65 = arith.constant 0.000000e+00 : f32
    %216 = vector.shape_cast %209 : vector<8x1xi1> to vector<8x1xi1>
    %217 = vector.broadcast %216 : vector<8x1xi1> to vector<8x128xi1>
    %218 = vector.broadcast %cst_65 : f32 to vector<8x128xf32>
    %219 = arith.select %217, %206, %218 : vector<8x128xi1>, vector<8x128xf32>
    %220 = arith.index_cast %c3_i32 : i32 to index
    %c0_66 = arith.constant 0 : index
    %c0_67 = arith.constant 0 : index
    %221 = vector.load %arg4[%220, %c0_66, %c0_67] : memref<4x8x128xf32, #tpu.memory_space<vmem>>, vector<1x8x128xf32>
    %222 = vector.shape_cast %221 : vector<1x8x128xf32> to vector<8x128xf32>
    %223 = vector.shape_cast %219 : vector<8x128xf32> to vector<1x8x128xf32>
    tpu.vector_store %arg4[%220, %c0_66, %c0_67], %223 {strides = array<i32>} : memref<4x8x128xf32, #tpu.memory_space<vmem>>, vector<1x8x128xf32>,
    %c4_i32_68 = arith.constant 4 : i32
    %c0_69 = arith.constant 0 : index
    %c0_70 = arith.constant 0 : index
    %224 = vector.load %arg7[%c0_69, %c0_70] : memref<8x128xf32, #tpu.memory_space<vmem>>, vector<8x128xf32>
    tpu.vector_store %arg7[%c0_69, %c0_70], %212 {strides = array<i32>} : memref<8x128xf32, #tpu.memory_space<vmem>>, vector<8x128xf32>,
    %c0_71 = arith.constant 0 : index
    %c0_72 = arith.constant 0 : index
    %225 = vector.load %arg8[%c0_71, %c0_72] : memref<8x128xf32, #tpu.memory_space<vmem>>, vector<8x128xf32>
    tpu.vector_store %arg8[%c0_71, %c0_72], %215 {strides = array<i32>} : memref<8x128xf32, #tpu.memory_space<vmem>>, vector<8x128xf32>,
    %c1_i32_73 = arith.constant 1 : i32
    %226 = arith.cmpi eq, %arg0, %c1_i32_73 : i32
    %227 = arith.extui %226 : i1 to i32
    %c0_i32_74 = arith.constant 0 : i32
    %228 = arith.cmpi ne, %227, %c0_i32_74 : i32
    scf.if %228 {
      %c0_75 = arith.constant 0 : index
      %c0_76 = arith.constant 0 : index
      %c0_77 = arith.constant 0 : index
      %229 = vector.load %arg5[%c0_75, %c0_76, %c0_77] : memref<1x8x128xf32, #tpu.memory_space<vmem>>, vector<1x8x128xf32>
      %230 = vector.shape_cast %229 : vector<1x8x128xf32> to vector<8x128xf32>
      %231 = vector.shape_cast %212 : vector<8x128xf32> to vector<1x8x128xf32>
      tpu.vector_store %arg5[%c0_75, %c0_76, %c0_77], %231 {strides = array<i32>} : memref<1x8x128xf32, #tpu.memory_space<vmem>>, vector<1x8x128xf32>,
      %c0_78 = arith.constant 0 : index
      %c0_79 = arith.constant 0 : index
      %c0_80 = arith.constant 0 : index
      %232 = vector.load %arg6[%c0_78, %c0_79, %c0_80] : memref<1x8x128xf32, #tpu.memory_space<vmem>>, vector<1x8x128xf32>
      %233 = vector.shape_cast %232 : vector<1x8x128xf32> to vector<8x128xf32>
      %234 = vector.shape_cast %215 : vector<8x128xf32> to vector<1x8x128xf32>
      tpu.vector_store %arg6[%c0_78, %c0_79, %c0_80], %234 {strides = array<i32>} : memref<1x8x128xf32, #tpu.memory_space<vmem>>, vector<1x8x128xf32>,
    } else {
    }
    return
  }
  func.func @transform_0(%arg0: i32) -> (i32, i32) {
    %c0_i32 = arith.constant 0 : i32
    %c0_i32_0 = arith.constant 0 : i32
    %c0_i32_1 = arith.constant 0 : i32
    return %c0_i32, %c0_i32_0 : i32, i32
  }
  func.func @transform_1(%arg0: i32) -> (i32, i32, i32) {
    %c0_i32 = arith.constant 0 : i32
    %c0_i32_0 = arith.constant 0 : i32
    %c0_i32_1 = arith.constant 0 : i32
    return %arg0, %c0_i32, %c0_i32_0 : i32, i32, i32
  }
  func.func @transform_2(%arg0: i32) -> (i32, i32) {
    %c0_i32 = arith.constant 0 : i32
    %c0_i32_0 = arith.constant 0 : i32
    %c0_i32_1 = arith.constant 0 : i32
    return %c0_i32, %c0_i32_0 : i32, i32
  }
  func.func @transform_3(%arg0: i32) -> (i32, i32, i32) {
    %c0_i32 = arith.constant 0 : i32
    %c0_i32_0 = arith.constant 0 : i32
    %c0_i32_1 = arith.constant 0 : i32
    return %arg0, %c0_i32, %c0_i32_0 : i32, i32, i32
  }
  func.func @transform_4(%arg0: i32) -> (i32, i32, i32) {
    %c0_i32 = arith.constant 0 : i32
    %c0_i32_0 = arith.constant 0 : i32
    %c0_i32_1 = arith.constant 0 : i32
    %c0_i32_2 = arith.constant 0 : i32
    return %c0_i32, %c0_i32_0, %c0_i32_1 : i32, i32, i32
  }
  func.func @transform_5(%arg0: i32) -> (i32, i32, i32) {
    %c0_i32 = arith.constant 0 : i32
    %c0_i32_0 = arith.constant 0 : i32
    %c0_i32_1 = arith.constant 0 : i32
    %c0_i32_2 = arith.constant 0 : i32
    return %c0_i32, %c0_i32_0, %c0_i32_1 : i32, i32, i32
  }
}

</mosaic_0001>

<llo_original>
// kernel: _forward_padded.1
$region0: #{_forward_padded.1}
  #allocation0 [shape = 'u32[]', space=smem, size = 0x4, offset = 0x4, fixed_abs, tag = 'smem constant byte address 0x4 - core index']
  #allocation1 [shape = 'u32[144,128]{1,0:T(1,128)}', space=vmem, size = 0x12000, scoped, tag = 'internal scratch']
  #allocation2 [shape = 'f32[8,128]{1,0:T(8,128)}', space=vmem, size = 0x1000, scoped, tag = 'scratch operand']
  #allocation3 [shape = 'f32[8,128]{1,0:T(8,128)}', space=vmem, size = 0x1000, scoped, tag = 'scratch operand']
  %s0 = inlined_call_operand.vmem [shape: s32[8,1], index: 0, kind: input, shape index: {}]
  %s1 = inlined_call_operand.vmem [shape: f32[8,8,512], index: 1, kind: input, shape index: {}]
  %s2 = inlined_call_operand.vmem [shape: bf16[128,512], index: 2, kind: input, shape index: {}]
  %s3 = inlined_call_operand.hbm [shape: f32[8,8,128], index: 3, kind: output, shape index: {0}]
  %s4 = inlined_call_operand.hbm [shape: f32[1,8,128], index: 4, kind: output, shape index: {1}]
  %s5 = inlined_call_operand.hbm [shape: f32[1,8,128], index: 5, kind: output, shape index: {2}]
  %6 = xla_tuple %s3, %s4, %s5
  %s7 = sld [smem:[#allocation0]]
  $region69: #{_forward_padded.1} parent=0
    _
  %s9 = ssub.s32 1, %s7
  %s10 = scalar_select 0, %s9, %s7
  $region1: #{_forward_padded.1} parent=0
    #allocation4 [shape = 'u8[32768]{0}', space=vmem, size = 0x8000, scoped, tag = 'output window, operand 0']
    #allocation5 [shape = 's32[2]{0}', space=sflag, size = 0x8, scoped, tag = 'scoped memory for _forward_padded.1']
    #allocation6 [shape = 'u8[4096]{0}', space=vmem, size = 0x1000, scoped, tag = 'output window, operand 1, single buffered']
    #allocation7 [shape = 's32[1]{0}', space=sflag, size = 0x4, scoped, tag = 'scoped memory for _forward_padded.1']
    #allocation8 [shape = 'u8[4096]{0}', space=vmem, size = 0x1000, scoped, tag = 'output window, operand 2, single buffered']
    %11 = vsyncpa [#allocation5], 0
    %s12 = scalar_lea.sflag [#allocation5], 1
    %13 = vsyncpa %s12, 0
    %14 = vsyncpa [#allocation7], 0
    loop: start=0, step=1, limit=4
    $region2: #{_forward_padded.1} parent=1 // loop_pre_header
      _
    $region3: #{_forward_padded.1} parent=1 // loop_header
      %s16 = sphi 0, %s20
      %p17 = scmp.ge.s32.totalorder %s16, 4
      %s24 = sphi 0, %s24
      %s26 = sphi 0, %s24
      %s27 = sphi 0, %s26
      %s41 = sphi 0, %s27
      %s47 = sphi 0, %s49
      %s50 = sphi 0, %s47
      %s51 = sphi 0, %s50
      %s67 = sphi 0, %s51
      %s71 = sphi 0, %s71
      %s73 = sphi 0, %s71
      %s74 = sphi 0, %s73
      %s88 = sphi 0, %s74
      %s94 = sphi 0, %s96
      %s97 = sphi 0, %s94
      %s98 = sphi 0, %s97
      %s114 = sphi 0, %s98
      %s118 = sphi 0, %s118
      %s120 = sphi 0, %s118
      %s121 = sphi 0, %s120
      %s135 = sphi 0, %s121
      %s139 = sphi 0, %s139
      %s141 = sphi 0, %s139
      %s142 = sphi 0, %s141
      %s156 = sphi 0, %s142
    $region4: #{_forward_padded.1} parent=1 // loop_header_branch
      %19 = sbr.rel (%p17) target = $region8
    $region5: #{_forward_padded.1} parent=1 // loop_body
      %s21 = ssub.s32 %s16, 1
      %s22 = ssub.s32 %s16, 2
      %s23 = sadd.s32 %s16, 1
      %s25 = sadd.s32 %s24, 1
      %p28 = scmp.eq.s32.totalorder %s16, 1
      %p29 = scmp.ne.s32.totalorder %s24, %s26
      %p30 = scmp.eq.s32.totalorder %s16, 0
      %p31 = por %p29, %p30
      %p32 = scmp.ne.s32.totalorder %s24, %s26
      %p33 = scmp.eq.s32.totalorder %s21, 1
      %p34 = por %p32, %p33
      %p35 = scmp.ne.s32.totalorder %s26, %s27
      %p36 = scmp.eq.s32.totalorder %s21, 0
      %p37 = por %p35, %p36
      %p38 = scmp.ne.s32.totalorder %s26, %s27
      %p39 = scmp.eq.s32.totalorder %s22, 1
      %p40 = por %p38, %p39
      %p42 = scmp.ne.s32.totalorder %s27, %s41
      %p43 = scmp.eq.s32.totalorder %s22, 0
      %p44 = por %p42, %p43
      %s45 = ssub.s32 %s16, %s23
      %p46 = scmp.eq.s32.totalorder %s45, 0
      %s48 = sadd.s32 %s47, 1
      %s49 = scalar_select %p46, %s47, %s48
      %p52 = pneg %p46
      %p53 = scmp.eq.s32.totalorder %s16, 1
      %p54 = por %p52, %p53
      %p55 = scmp.ne.s32.totalorder %s47, %s50
      %p56 = scmp.eq.s32.totalorder %s16, 0
      %p57 = por %p55, %p56
      %p58 = scmp.ne.s32.totalorder %s47, %s50
      %p59 = scmp.eq.s32.totalorder %s21, 1
      %p60 = por %p58, %p59
      %p61 = scmp.ne.s32.totalorder %s50, %s51
      %p62 = scmp.eq.s32.totalorder %s21, 0
      %p63 = por %p61, %p62
      %p64 = scmp.ne.s32.totalorder %s50, %s51
      %p65 = scmp.eq.s32.totalorder %s22, 1
      %p66 = por %p64, %p65
      %p68 = scmp.ne.s32.totalorder %s51, %s67
      %p69 = scmp.eq.s32.totalorder %s22, 0
      %p70 = por %p68, %p69
      %s72 = sadd.s32 %s71, 1
      %p75 = scmp.eq.s32.totalorder %s16, 1
      %p76 = scmp.ne.s32.totalorder %s71, %s73
      %p77 = scmp.eq.s32.totalorder %s16, 0
      %p78 = por %p76, %p77
      %p79 = scmp.ne.s32.totalorder %s71, %s73
      %p80 = scmp.eq.s32.totalorder %s21, 1
      %p81 = por %p79, %p80
      %p82 = scmp.ne.s32.totalorder %s73, %s74
      %p83 = scmp.eq.s32.totalorder %s21, 0
      %p84 = por %p82, %p83
      %p85 = scmp.ne.s32.totalorder %s73, %s74
      %p86 = scmp.eq.s32.totalorder %s22, 1
      %p87 = por %p85, %p86
      %p89 = scmp.ne.s32.totalorder %s74, %s88
      %p90 = scmp.eq.s32.totalorder %s22, 0
      %p91 = por %p89, %p90
      %s92 = ssub.s32 %s16, %s23
      %p93 = scmp.eq.s32.totalorder %s92, 0
      %s95 = sadd.s32 %s94, 1
      %s96 = scalar_select %p93, %s94, %s95
      %p99 = pneg %p93
      %p100 = scmp.eq.s32.totalorder %s16, 1
      %p101 = por %p99, %p100
      %p102 = scmp.ne.s32.totalorder %s94, %s97
      %p103 = scmp.eq.s32.totalorder %s16, 0
      %p104 = por %p102, %p103
      %p105 = scmp.ne.s32.totalorder %s94, %s97
      %p106 = scmp.eq.s32.totalorder %s21, 1
      %p107 = por %p105, %p106
      %p108 = scmp.ne.s32.totalorder %s97, %s98
      %p109 = scmp.eq.s32.totalorder %s21, 0
      %p110 = por %p108, %p109
      %p111 = scmp.ne.s32.totalorder %s97, %s98
      %p112 = scmp.eq.s32.totalorder %s22, 1
      %p113 = por %p111, %p112
      %p115 = scmp.ne.s32.totalorder %s98, %s114
      %p116 = scmp.eq.s32.totalorder %s22, 0
      %p117 = por %p115, %p116
      %s119 = sadd.s32 %s118, 1
      %p122 = scmp.eq.s32.totalorder %s16, 1
      %p123 = scmp.ne.s32.totalorder %s118, %s120
      %p124 = scmp.eq.s32.totalorder %s16, 0
      %p125 = por %p123, %p124
      %p126 = scmp.ne.s32.totalorder %s118, %s120
      %p127 = scmp.eq.s32.totalorder %s21, 1
      %p128 = por %p126, %p127
      %p129 = scmp.ne.s32.totalorder %s120, %s121
      %p130 = scmp.eq.s32.totalorder %s21, 0
      %p131 = por %p129, %p130
      %p132 = scmp.ne.s32.totalorder %s120, %s121
      %p133 = scmp.eq.s32.totalorder %s22, 1
      %p134 = por %p132, %p133
      %p136 = scmp.ne.s32.totalorder %s121, %s135
      %p137 = scmp.eq.s32.totalorder %s22, 0
      %p138 = por %p136, %p137
      %s140 = sadd.s32 %s139, 1
      %p143 = scmp.eq.s32.totalorder %s16, 1
      %p144 = scmp.ne.s32.totalorder %s139, %s141
      %p145 = scmp.eq.s32.totalorder %s16, 0
      %p146 = por %p144, %p145
      %p147 = scmp.ne.s32.totalorder %s139, %s141
      %p148 = scmp.eq.s32.totalorder %s21, 1
      %p149 = por %p147, %p148
      %p150 = scmp.ne.s32.totalorder %s141, %s142
      %p151 = scmp.eq.s32.totalorder %s21, 0
      %p152 = por %p150, %p151
      %p153 = scmp.ne.s32.totalorder %s141, %s142
      %p154 = scmp.eq.s32.totalorder %s22, 1
      %p155 = por %p153, %p154
      %p157 = scmp.ne.s32.totalorder %s142, %s156
      %p158 = scmp.eq.s32.totalorder %s22, 0
      %p159 = por %p157, %p158
      %p160 = scmp.le.s32.totalorder 1, %s16
      %p161 = scmp.lt.s32.totalorder %s16, 3
      %p162 = pnand %p160, %p161
      %p163 = pneg %p162
      // Predicated region
      $region9: #{_forward_padded.1} parent=5 // pred_check
        _
      $region10: #{_forward_padded.1} parent=5 // pred_check_branch
        %165 = sbr.rel (%p162) target = $region12
      $region11: #{_forward_padded.1} parent=5 // pred_region
        %s166 = ssub.s32 %s16, 1
        // Predicated region
        $region13: #{_forward_padded.1} parent=11 // pred_check
          %p167 = pneg %p37
        $region14: #{_forward_padded.1} parent=11 // pred_check_branch
          %169 = sbr.rel (%p167) target = $region16
        $region15: #{_forward_padded.1} parent=11 // pred_region
          _
        $region16: #{_forward_padded.1} parent=11 // pred_fallthru
          _
        // Predicated region
        $region17: #{_forward_padded.1} parent=11 // pred_check
          %p170 = pneg %p84
        $region18: #{_forward_padded.1} parent=11 // pred_check_branch
          %172 = sbr.rel (%p170) target = $region20
        $region19: #{_forward_padded.1} parent=11 // pred_region
          _
        $region20: #{_forward_padded.1} parent=11 // pred_fallthru
          _
      $region12: #{_forward_padded.1} parent=5 // pred_fallthru
        _
      %p173 = scmp.lt.s32.totalorder %s16, 2
      // Predicated region
      $region21: #{_forward_padded.1} parent=5 // pred_check
        %p174 = pneg %p173
      $region22: #{_forward_padded.1} parent=5 // pred_check_branch
        %176 = sbr.rel (%p174) target = $region24
      $region23: #{_forward_padded.1} parent=5 // pred_region
        // Predicated region
        $region25: #{_forward_padded.1} parent=23 // pred_check
          %p177 = pneg %p57
        $region26: #{_forward_padded.1} parent=23 // pred_check_branch
          %179 = sbr.rel (%p177) target = $region28
        $region27: #{_forward_padded.1} parent=23 // pred_region
          %s180 = smul.u32 4, %s16
          %p181 = scmp.lt.s32.totalorder %s180, 7
          %s182 = scalar_select %p181, %s180, 7
          %s183 = smul.addr %s182, 4
          %s184 = smul.addr %s183, 8
          %s185 = scalar_lea.vmem %s1, %s184
          %s186 = smul.u32 4, %s16
        $region28: #{_forward_padded.1} parent=23 // pred_fallthru
          _
      $region24: #{_forward_padded.1} parent=5 // pred_fallthru
        _
      %p187 = scmp.le.s32.totalorder 1, %s16
      %p188 = scmp.lt.s32.totalorder %s16, 3
      %p189 = pnand %p187, %p188
      %p190 = pneg %p189
      // Predicated region
      $region29: #{_forward_padded.1} parent=5 // pred_check
        _
      $region30: #{_forward_padded.1} parent=5 // pred_check_branch
        %192 = sbr.rel (%p189) target = $region32
      $region31: #{_forward_padded.1} parent=5 // pred_region
        %s193 = ssub.s32 %s16, 1
        %p194 = pneg %p37
        %p195 = pneg %p34
        %s196 = smul.u32 4, %s21
        %p197 = scmp.lt.s32.totalorder %s196, 7
        %s198 = scalar_select %p197, %s196, 7
        %s199 = smul.addr %s198, 4
        %s200 = smul.addr %s199, 8
        %s201 = scalar_lea.vmem %s1, %s200
        %p202 = pneg %p63
        %p203 = pneg %p60
        %p204 = pneg %p84
        %p205 = pneg %p81
        %p206 = pneg %p110
        %p207 = pneg %p107
        %s208 = sand.u32 %s97, 1
        %s209 = scalar_lea.sflag [#allocation5], %s208
        %s210 = sand.u32 %s97, 1
        %s211 = smul.addr %s210, 32
        %s212 = scalar_lea.vmem [#allocation4], %s211
        %p213 = pneg %p131
        %p214 = pneg %p128
        %p215 = pneg %p152
        %p216 = pneg %p149
        %s217 = smul.u32 4, %s21
        %p218 = scmp.lt.s32.totalorder %s217, 7
        %s219 = scalar_select %p218, %s217, 7
        %s220 = smul.addr %s219, 4
        %s221 = smul.addr %s220, 8
        %s222 = scalar_lea.vmem %s1, %s221
        %s223 = smul.u32 4, %s21
        %s224 = smul.u32 4, %s21
        %p226 = scmp.eq.s32.totalorder %s21, 0
        // Predicated region
        $region33: #{_forward_padded.1} parent=31 // pred_check
          %p227 = pneg %p226
        $region34: #{_forward_padded.1} parent=31 // pred_check_branch
          %229 = sbr.rel (%p227) target = $region36
        $region35: #{_forward_padded.1} parent=31 // pred_region
          %230 = vst [vmem:[#allocation2] sm:$0xff] 0.0
          %231 = vst [vmem:[#allocation3] sm:$0xff] 0.0
        $region36: #{_forward_padded.1} parent=31 // pred_fallthru
          _
        %v232 = vld [vmem:[%s0] sm:$0xff]
        %v233 = vld [vmem:[%s2] sm:$0xff]
        %v234 = vld [vmem:[%s2 + $0x8] sm:$0xff]
        %v235 = vld [vmem:[%s2 + $0x10] sm:$0xff]
        %v236 = vld [vmem:[%s2 + $0x18] sm:$0xff]
        %v237 = vld [vmem:[%s2 + $0x20] sm:$0xff]
        %v238 = vld [vmem:[%s2 + $0x28] sm:$0xff]
        %v239 = vld [vmem:[%s2 + $0x30] sm:$0xff]
        %v240 = vld [vmem:[%s2 + $0x38] sm:$0xff]
        %v241 = vld [vmem:[%s2 + $0x40] sm:$0xff]
        %v242 = vld [vmem:[%s2 + $0x48] sm:$0xff]
        %v243 = vld [vmem:[%s2 + $0x50] sm:$0xff]
        %v244 = vld [vmem:[%s2 + $0x58] sm:$0xff]
        %v245 = vld [vmem:[%s2 + $0x60] sm:$0xff]
        %v246 = vld [vmem:[%s2 + $0x68] sm:$0xff]
        %v247 = vld [vmem:[%s2 + $0x70] sm:$0xff]
        %v248 = vld [vmem:[%s2 + $0x78] sm:$0xff]
        %v249 = vld [vmem:[%s2 + $0x80] sm:$0xff]
        %v250 = vld [vmem:[%s2 + $0x88] sm:$0xff]
        %v251 = vld [vmem:[%s2 + $0x90] sm:$0xff]
        %v252 = vld [vmem:[%s2 + $0x98] sm:$0xff]
        %v253 = vld [vmem:[%s2 + $0xa0] sm:$0xff]
        %v254 = vld [vmem:[%s2 + $0xa8] sm:$0xff]
        %v255 = vld [vmem:[%s2 + $0xb0] sm:$0xff]
        %v256 = vld [vmem:[%s2 + $0xb8] sm:$0xff]
        %v257 = vld [vmem:[%s2 + $0xc0] sm:$0xff]
        %v258 = vld [vmem:[%s2 + $0xc8] sm:$0xff]
        %v259 = vld [vmem:[%s2 + $0xd0] sm:$0xff]
        %v260 = vld [vmem:[%s2 + $0xd8] sm:$0xff]
        %v261 = vld [vmem:[%s2 + $0xe0] sm:$0xff]
        %v262 = vld [vmem:[%s2 + $0xe8] sm:$0xff]
        %v263 = vld [vmem:[%s2 + $0xf0] sm:$0xff]
        %v264 = vld [vmem:[%s2 + $0xf8] sm:$0xff]
        %s265 = smul.u32 %s21, 4
        %v266 = vld [vmem:[#allocation2] sm:$0xff]
        %v267 = vld [vmem:[#allocation3] sm:$0xff]
        %v268 = vld [vmem:[%s222] sm:$0xff]
        %v269 = vld [vmem:[%s222 + $0x8] sm:$0xff]
        %v270 = vld [vmem:[%s222 + $0x10] sm:$0xff]
        %v271 = vld [vmem:[%s222 + $0x18] sm:$0xff]
        %v272 = vpack.c.bf16 %v266, %v266
        %v305 = vunpack.c.l.b16 %v233
        %v306 = vunpack.c.h.b16 %v233
        %v307 = vunpack.c.l.b16 %v234
        %v308 = vunpack.c.h.b16 %v234
        %v309 = vunpack.c.l.b16 %v235
        %v310 = vunpack.c.h.b16 %v235
        %v311 = vunpack.c.l.b16 %v236
        %v312 = vunpack.c.h.b16 %v236
        %v313 = vunpack.c.l.b16 %v237
        %v314 = vunpack.c.h.b16 %v237
        %v315 = vunpack.c.l.b16 %v238
        %v316 = vunpack.c.h.b16 %v238
        %v317 = vunpack.c.l.b16 %v239
        %v318 = vunpack.c.h.b16 %v239
        %v319 = vunpack.c.l.b16 %v240
        %v320 = vunpack.c.h.b16 %v240
        %v321 = vunpack.c.l.b16 %v241
        %v322 = vunpack.c.h.b16 %v241
        %v323 = vunpack.c.l.b16 %v242
        %v324 = vunpack.c.h.b16 %v242
        %v325 = vunpack.c.l.b16 %v243
        %v326 = vunpack.c.h.b16 %v243
        %v327 = vunpack.c.l.b16 %v244
        %v328 = vunpack.c.h.b16 %v244
        %v329 = vunpack.c.l.b16 %v245
        %v330 = vunpack.c.h.b16 %v245
        %v331 = vunpack.c.l.b16 %v246
        %v332 = vunpack.c.h.b16 %v246
        %v333 = vunpack.c.l.b16 %v247
        %v334 = vunpack.c.h.b16 %v247
        %v335 = vunpack.c.l.b16 %v248
        %v336 = vunpack.c.h.b16 %v248
        %v337 = vunpack.c.l.b16 %v249
        %v338 = vunpack.c.h.b16 %v249
        %v339 = vunpack.c.l.b16 %v250
        %v340 = vunpack.c.h.b16 %v250
        %v341 = vunpack.c.l.b16 %v251
        %v342 = vunpack.c.h.b16 %v251
        %v343 = vunpack.c.l.b16 %v252
        %v344 = vunpack.c.h.b16 %v252
        %v345 = vunpack.c.l.b16 %v253
        %v346 = vunpack.c.h.b16 %v253
        %v347 = vunpack.c.l.b16 %v254
        %v348 = vunpack.c.h.b16 %v254
        %v349 = vunpack.c.l.b16 %v255
        %v350 = vunpack.c.h.b16 %v255
        %v351 = vunpack.c.l.b16 %v256
        %v352 = vunpack.c.h.b16 %v256
        %v353 = vunpack.c.l.b16 %v257
        %v354 = vunpack.c.h.b16 %v257
        %v355 = vunpack.c.l.b16 %v258
        %v356 = vunpack.c.h.b16 %v258
        %v357 = vunpack.c.l.b16 %v259
        %v358 = vunpack.c.h.b16 %v259
        %v359 = vunpack.c.l.b16 %v260
        %v360 = vunpack.c.h.b16 %v260
        %v361 = vunpack.c.l.b16 %v261
        %v362 = vunpack.c.h.b16 %v261
        %v363 = vunpack.c.l.b16 %v262
        %v364 = vunpack.c.h.b16 %v262
        %v365 = vunpack.c.l.b16 %v263
        %v366 = vunpack.c.h.b16 %v263
        %v367 = vunpack.c.l.b16 %v264
        %v368 = vunpack.c.h.b16 %v264
        %v369 = vpack.c.b16 %v309, %v305
        %v370 = vpack.c.b16 %v310, %v306
        %v371 = vpack.c.b16 %v311, %v307
        %v372 = vpack.c.b16 %v312, %v308
        %v373 = vpack.c.b16 %v317, %v313
        %v374 = vpack.c.b16 %v318, %v314
        %v375 = vpack.c.b16 %v319, %v315
        %v376 = vpack.c.b16 %v320, %v316
        %v377 = vpack.c.b16 %v325, %v321
        %v378 = vpack.c.b16 %v326, %v322
        %v379 = vpack.c.b16 %v327, %v323
        %v380 = vpack.c.b16 %v328, %v324
        %v381 = vpack.c.b16 %v333, %v329
        %v382 = vpack.c.b16 %v334, %v330
        %v383 = vpack.c.b16 %v335, %v331
        %v384 = vpack.c.b16 %v336, %v332
        %v385 = vpack.c.b16 %v341, %v337
        %v386 = vpack.c.b16 %v342, %v338
        %v387 = vpack.c.b16 %v343, %v339
        %v388 = vpack.c.b16 %v344, %v340
        %v389 = vpack.c.b16 %v349, %v345
        %v390 = vpack.c.b16 %v350, %v346
        %v391 = vpack.c.b16 %v351, %v347
        %v392 = vpack.c.b16 %v352, %v348
        %v393 = vpack.c.b16 %v357, %v353
        %v394 = vpack.c.b16 %v358, %v354
        %v395 = vpack.c.b16 %v359, %v355
        %v396 = vpack.c.b16 %v360, %v356
        %v397 = vpack.c.b16 %v365, %v361
        %v398 = vpack.c.b16 %v366, %v362
        %v399 = vpack.c.b16 %v367, %v363
        %v400 = vpack.c.b16 %v368, %v364
        %433 = vmatprep.subr.bf16.mxu0 %v370
        %434 = vmatpush1.bf16.msra.mxu0 %v369
        %435 = vmatprep.subr.bf16.mxu0 %v374
        %436 = vmatpush1.bf16.msra.mxu0 %v373
        %437 = vmatprep.subr.bf16.mxu0 %v378
        %438 = vmatpush1.bf16.msra.mxu0 %v377
        %439 = vmatprep.subr.bf16.mxu0 %v382
        %440 = vmatpush1.bf16.msra.mxu0 %v381
        %441 = vmatprep.subr.bf16.mxu0 %v386
        %442 = vmatpush1.bf16.msra.mxu0 %v385
        %443 = vmatprep.subr.bf16.mxu0 %v390
        %444 = vmatpush1.bf16.msra.mxu0 %v389
        %445 = vmatprep.subr.bf16.mxu0 %v394
        %446 = vmatpush1.bf16.msra.mxu0 %v393
        %447 = vmatprep.subr.bf16.mxu0 %v398
        %448 = vmatpush1.bf16.msra.mxu0 %v397
        %449 = vmatprep.subr.bf16.mxu0 0
        %450 = vmatpush1.bf16.msra.mxu0 0
        %451 = vmatprep.subr.bf16.mxu0 0
        %452 = vmatpush1.bf16.msra.mxu0 0
        %453 = vmatprep.subr.bf16.mxu0 0
        %454 = vmatpush1.bf16.msra.mxu0 0
        %455 = vmatprep.subr.bf16.mxu0 0
        %456 = vmatpush1.bf16.msra.mxu0 0
        %457 = vmatprep.subr.bf16.mxu0 0
        %458 = vmatpush1.bf16.msra.mxu0 0
        %459 = vmatprep.subr.bf16.mxu0 0
        %460 = vmatpush1.bf16.msra.mxu0 0
        %461 = vmatprep.subr.bf16.mxu0 0
        %462 = vmatpush1.bf16.msra.mxu0 0
        %463 = vmatprep.subr.bf16.mxu0 0
        %464 = vmatpush1.bf16.msra.mxu0 0
        %465 = vmatprep.mubr.bf16.mxu0 0
        %466 = vmatmul.mubr.bf16.gmra.mrb[0].mxu0 %v272
        %v467 = vpop.f32.mrb[0].mxu0
        %v468 = vadd.f32 0.0, %v467
        %v469 = vpop.f32.mrb[0].mxu0
        %v470 = vadd.f32 0.0, %v469
        %v471 = vpop.f32.mrb[0].mxu0
        %v472 = vpop.f32.mrb[0].mxu0
        %473 = vdwg.mxu0
        %474 = vmatprep.subr.bf16.mxu0 %v372
        %475 = vmatpush1.bf16.msra.mxu0 %v371
        %476 = vmatprep.subr.bf16.mxu0 %v376
        %477 = vmatpush1.bf16.msra.mxu0 %v375
        %478 = vmatprep.subr.bf16.mxu0 %v380
        %479 = vmatpush1.bf16.msra.mxu0 %v379
        %480 = vmatprep.subr.bf16.mxu0 %v384
        %481 = vmatpush1.bf16.msra.mxu0 %v383
        %482 = vmatprep.subr.bf16.mxu0 %v388
        %483 = vmatpush1.bf16.msra.mxu0 %v387
        %484 = vmatprep.subr.bf16.mxu0 %v392
        %485 = vmatpush1.bf16.msra.mxu0 %v391
        %486 = vmatprep.subr.bf16.mxu0 %v396
        %487 = vmatpush1.bf16.msra.mxu0 %v395
        %488 = vmatprep.subr.bf16.mxu0 %v400
        %489 = vmatpush1.bf16.msra.mxu0 %v399
        %490 = vmatprep.subr.bf16.mxu0 0
        %491 = vmatpush1.bf16.msra.mxu0 0
        %492 = vmatprep.subr.bf16.mxu0 0
        %493 = vmatpush1.bf16.msra.mxu0 0
        %494 = vmatprep.subr.bf16.mxu0 0
        %495 = vmatpush1.bf16.msra.mxu0 0
        %496 = vmatprep.subr.bf16.mxu0 0
        %497 = vmatpush1.bf16.msra.mxu0 0
        %498 = vmatprep.subr.bf16.mxu0 0
        %499 = vmatpush1.bf16.msra.mxu0 0
        %500 = vmatprep.subr.bf16.mxu0 0
        %501 = vmatpush1.bf16.msra.mxu0 0
        %502 = vmatprep.subr.bf16.mxu0 0
        %503 = vmatpush1.bf16.msra.mxu0 0
        %504 = vmatprep.subr.bf16.mxu0 0
        %505 = vmatpush1.bf16.msra.mxu0 0
        %506 = vmatprep.mubr.bf16.mxu0 0
        %507 = vmatmul.mubr.bf16.gmra.mrb[0].mxu0 %v272
        %v508 = vpop.f32.mrb[0].mxu0
        %v509 = vadd.f32 0.0, %v508
        %v510 = vpop.f32.mrb[0].mxu0
        %v511 = vadd.f32 0.0, %v510
        %v512 = vpop.f32.mrb[0].mxu0
        %v513 = vpop.f32.mrb[0].mxu0
        %514 = vdwg.mxu0
        %v515 = vadd.f32 %v268, %v468
        %v516 = vadd.f32 %v269, %v470
        %v517 = vadd.f32 %v270, %v509
        %v518 = vadd.f32 %v271, %v511
        %v519 = vmul.f32 %v515, 0.5
        %v520 = vtanh.pop %v519
        %v521 = vadd.f32 %v520, 1.0
        %v522 = vmul.f32 %v521, 0.5
        %v523 = vmul.f32 %v516, 0.5
        %v524 = vtanh.pop %v523
        %v525 = vadd.f32 %v524, 1.0
        %v526 = vmul.f32 %v525, 0.5
        %v527 = vtanh.pop %v517
        %v528 = vmul.f32 %v518, 0.5
        %v529 = vtanh.pop %v528
        %v530 = vadd.f32 %v529, 1.0
        %v531 = vmul.f32 %v530, 0.5
        %v532 = vmul.f32 %v526, %v267
        %v533 = vmul.f32 %v522, %v527
        %v534 = vadd.f32 %v532, %v533
        %v535 = vtanh.pop %v534
        %v536 = vmul.f32 %v531, %v535
        %v537 = vstv %s265
        %vm538 = vcmp.lt.s32.totalorder %v537, %v232
        %v539 = vsel %vm538, 1, 0
        %540 = vset.pattern.permute.xlu0 0
        %541 = vperm.xlu0 %540, %v539
        %v542 = vpop.permute.xlu0 %541
        %vm543 = vcmp.eq.s32.totalorder %v542, 1
        %v544 = vsel %vm543, %v536, %v266
        %v545 = vsel %vm543, %v534, %v267
        %v546 = vsel %vm543, %v536, 0.0
        %547 = vst [vmem:[%s212] sm:$0xff] %v546
        %s548 = scalar_lea.vmem %s222, 32
        %v549 = vld [vmem:[%s548] sm:$0xff]
        %v550 = vld [vmem:[%s548 + $0x8] sm:$0xff]
        %v551 = vld [vmem:[%s548 + $0x10] sm:$0xff]
        %v552 = vld [vmem:[%s548 + $0x18] sm:$0xff]
        %v553 = vpack.c.bf16 %v544, %v544
        %554 = vmatprep.subr.bf16.mxu0 %v370
        %555 = vmatpush1.bf16.msra.mxu0 %v369
        %556 = vmatprep.subr.bf16.mxu0 %v374
        %557 = vmatpush1.bf16.msra.mxu0 %v373
        %558 = vmatprep.subr.bf16.mxu0 %v378
        %559 = vmatpush1.bf16.msra.mxu0 %v377
        %560 = vmatprep.subr.bf16.mxu0 %v382
        %561 = vmatpush1.bf16.msra.mxu0 %v381
        %562 = vmatprep.subr.bf16.mxu0 %v386
        %563 = vmatpush1.bf16.msra.mxu0 %v385
        %564 = vmatprep.subr.bf16.mxu0 %v390
        %565 = vmatpush1.bf16.msra.mxu0 %v389
        %566 = vmatprep.subr.bf16.mxu0 %v394
        %567 = vmatpush1.bf16.msra.mxu0 %v393
        %568 = vmatprep.subr.bf16.mxu0 %v398
        %569 = vmatpush1.bf16.msra.mxu0 %v397
        %570 = vmatprep.subr.bf16.mxu0 0
        %571 = vmatpush1.bf16.msra.mxu0 0
        %572 = vmatprep.subr.bf16.mxu0 0
        %573 = vmatpush1.bf16.msra.mxu0 0
        %574 = vmatprep.subr.bf16.mxu0 0
        %575 = vmatpush1.bf16.msra.mxu0 0
        %576 = vmatprep.subr.bf16.mxu0 0
        %577 = vmatpush1.bf16.msra.mxu0 0
        %578 = vmatprep.subr.bf16.mxu0 0
        %579 = vmatpush1.bf16.msra.mxu0 0
        %580 = vmatprep.subr.bf16.mxu0 0
        %581 = vmatpush1.bf16.msra.mxu0 0
        %582 = vmatprep.subr.bf16.mxu0 0
        %583 = vmatpush1.bf16.msra.mxu0 0
        %584 = vmatprep.subr.bf16.mxu0 0
        %585 = vmatpush1.bf16.msra.mxu0 0
        %586 = vmatprep.mubr.bf16.mxu0 0
        %587 = vmatmul.mubr.bf16.gmra.mrb[0].mxu0 %v553
        %v588 = vpop.f32.mrb[0].mxu0
        %v589 = vadd.f32 0.0, %v588
        %v590 = vpop.f32.mrb[0].mxu0
        %v591 = vadd.f32 0.0, %v590
        %v592 = vpop.f32.mrb[0].mxu0
        %v593 = vpop.f32.mrb[0].mxu0
        %594 = vdwg.mxu0
        %595 = vmatprep.subr.bf16.mxu0 %v372
        %596 = vmatpush1.bf16.msra.mxu0 %v371
        %597 = vmatprep.subr.bf16.mxu0 %v376
        %598 = vmatpush1.bf16.msra.mxu0 %v375
        %599 = vmatprep.subr.bf16.mxu0 %v380
        %600 = vmatpush1.bf16.msra.mxu0 %v379
        %601 = vmatprep.subr.bf16.mxu0 %v384
        %602 = vmatpush1.bf16.msra.mxu0 %v383
        %603 = vmatprep.subr.bf16.mxu0 %v388
        %604 = vmatpush1.bf16.msra.mxu0 %v387
        %605 = vmatprep.subr.bf16.mxu0 %v392
        %606 = vmatpush1.bf16.msra.mxu0 %v391
        %607 = vmatprep.subr.bf16.mxu0 %v396
        %608 = vmatpush1.bf16.msra.mxu0 %v395
        %609 = vmatprep.subr.bf16.mxu0 %v400
        %610 = vmatpush1.bf16.msra.mxu0 %v399
        %611 = vmatprep.subr.bf16.mxu0 0
        %612 = vmatpush1.bf16.msra.mxu0 0
        %613 = vmatprep.subr.bf16.mxu0 0
        %614 = vmatpush1.bf16.msra.mxu0 0
        %615 = vmatprep.subr.bf16.mxu0 0
        %616 = vmatpush1.bf16.msra.mxu0 0
        %617 = vmatprep.subr.bf16.mxu0 0
        %618 = vmatpush1.bf16.msra.mxu0 0
        %619 = vmatprep.subr.bf16.mxu0 0
        %620 = vmatpush1.bf16.msra.mxu0 0
        %621 = vmatprep.subr.bf16.mxu0 0
        %622 = vmatpush1.bf16.msra.mxu0 0
        %623 = vmatprep.subr.bf16.mxu0 0
        %624 = vmatpush1.bf16.msra.mxu0 0
        %625 = vmatprep.subr.bf16.mxu0 0
        %626 = vmatpush1.bf16.msra.mxu0 0
        %627 = vmatprep.mubr.bf16.mxu0 0
        %628 = vmatmul.mubr.bf16.gmra.mrb[0].mxu0 %v553
        %v629 = vpop.f32.mrb[0].mxu0
        %v630 = vadd.f32 0.0, %v629
        %v631 = vpop.f32.mrb[0].mxu0
        %v632 = vadd.f32 0.0, %v631
        %v633 = vpop.f32.mrb[0].mxu0
        %v634 = vpop.f32.mrb[0].mxu0
        %635 = vdwg.mxu0
        %v636 = vadd.f32 %v549, %v589
        %v637 = vadd.f32 %v550, %v591
        %v638 = vadd.f32 %v551, %v630
        %v639 = vadd.f32 %v552, %v632
        %v640 = vmul.f32 %v636, 0.5
        %v641 = vtanh.pop %v640
        %v642 = vadd.f32 %v641, 1.0
        %v643 = vmul.f32 %v642, 0.5
        %v644 = vmul.f32 %v637, 0.5
        %v645 = vtanh.pop %v644
        %v646 = vadd.f32 %v645, 1.0
        %v647 = vmul.f32 %v646, 0.5
        %v648 = vtanh.pop %v638
        %v649 = vmul.f32 %v639, 0.5
        %v650 = vtanh.pop %v649
        %v651 = vadd.f32 %v650, 1.0
        %v652 = vmul.f32 %v651, 0.5
        %v653 = vmul.f32 %v647, %v545
        %v654 = vmul.f32 %v643, %v648
        %v655 = vadd.f32 %v653, %v654
        %v656 = vtanh.pop %v655
        %v657 = vmul.f32 %v652, %v656
        %s658 = sadd.s32 %s265, 1
        %v659 = vstv %s658
        %vm660 = vcmp.lt.s32.totalorder %v659, %v232
        %v661 = vsel %vm660, 1, 0
        %662 = vset.pattern.permute.xlu0 0
        %663 = vperm.xlu0 %662, %v661
        %v664 = vpop.permute.xlu0 %663
        %vm665 = vcmp.eq.s32.totalorder %v664, 1
        %v666 = vsel %vm665, %v657, %v544
        %v667 = vsel %vm665, %v655, %v545
        %v668 = vsel %vm665, %v657, 0.0
        %s669 = scalar_lea.vmem %s212, 8 [#allocation4]
        %670 = vst [vmem:[%s669] sm:$0xff] %v668
        %s671 = scalar_lea.vmem %s222, 64
        %v672 = vld [vmem:[%s671] sm:$0xff]
        %v673 = vld [vmem:[%s671 + $0x8] sm:$0xff]
        %v674 = vld [vmem:[%s671 + $0x10] sm:$0xff]
        %v675 = vld [vmem:[%s671 + $0x18] sm:$0xff]
        %v676 = vpack.c.bf16 %v666, %v666
        %677 = vmatprep.subr.bf16.mxu0 %v370
        %678 = vmatpush1.bf16.msra.mxu0 %v369
        %679 = vmatprep.subr.bf16.mxu0 %v374
        %680 = vmatpush1.bf16.msra.mxu0 %v373
        %681 = vmatprep.subr.bf16.mxu0 %v378
        %682 = vmatpush1.bf16.msra.mxu0 %v377
        %683 = vmatprep.subr.bf16.mxu0 %v382
        %684 = vmatpush1.bf16.msra.mxu0 %v381
        %685 = vmatprep.subr.bf16.mxu0 %v386
        %686 = vmatpush1.bf16.msra.mxu0 %v385
        %687 = vmatprep.subr.bf16.mxu0 %v390
        %688 = vmatpush1.bf16.msra.mxu0 %v389
        %689 = vmatprep.subr.bf16.mxu0 %v394
        %690 = vmatpush1.bf16.msra.mxu0 %v393
        %691 = vmatprep.subr.bf16.mxu0 %v398
        %692 = vmatpush1.bf16.msra.mxu0 %v397
        %693 = vmatprep.subr.bf16.mxu0 0
        %694 = vmatpush1.bf16.msra.mxu0 0
        %695 = vmatprep.subr.bf16.mxu0 0
        %696 = vmatpush1.bf16.msra.mxu0 0
        %697 = vmatprep.subr.bf16.mxu0 0
        %698 = vmatpush1.bf16.msra.mxu0 0
        %699 = vmatprep.subr.bf16.mxu0 0
        %700 = vmatpush1.bf16.msra.mxu0 0
        %701 = vmatprep.subr.bf16.mxu0 0
        %702 = vmatpush1.bf16.msra.mxu0 0
        %703 = vmatprep.subr.bf16.mxu0 0
        %704 = vmatpush1.bf16.msra.mxu0 0
        %705 = vmatprep.subr.bf16.mxu0 0
        %706 = vmatpush1.bf16.msra.mxu0 0
        %707 = vmatprep.subr.bf16.mxu0 0
        %708 = vmatpush1.bf16.msra.mxu0 0
        %709 = vmatprep.mubr.bf16.mxu0 0
        %710 = vmatmul.mubr.bf16.gmra.mrb[0].mxu0 %v676
        %v711 = vpop.f32.mrb[0].mxu0
        %v712 = vadd.f32 0.0, %v711
        %v713 = vpop.f32.mrb[0].mxu0
        %v714 = vadd.f32 0.0, %v713
        %v715 = vpop.f32.mrb[0].mxu0
        %v716 = vpop.f32.mrb[0].mxu0
        %717 = vdwg.mxu0
        %718 = vmatprep.subr.bf16.mxu0 %v372
        %719 = vmatpush1.bf16.msra.mxu0 %v371
        %720 = vmatprep.subr.bf16.mxu0 %v376
        %721 = vmatpush1.bf16.msra.mxu0 %v375
        %722 = vmatprep.subr.bf16.mxu0 %v380
        %723 = vmatpush1.bf16.msra.mxu0 %v379
        %724 = vmatprep.subr.bf16.mxu0 %v384
        %725 = vmatpush1.bf16.msra.mxu0 %v383
        %726 = vmatprep.subr.bf16.mxu0 %v388
        %727 = vmatpush1.bf16.msra.mxu0 %v387
        %728 = vmatprep.subr.bf16.mxu0 %v392
        %729 = vmatpush1.bf16.msra.mxu0 %v391
        %730 = vmatprep.subr.bf16.mxu0 %v396
        %731 = vmatpush1.bf16.msra.mxu0 %v395
        %732 = vmatprep.subr.bf16.mxu0 %v400
        %733 = vmatpush1.bf16.msra.mxu0 %v399
        %734 = vmatprep.subr.bf16.mxu0 0
        %735 = vmatpush1.bf16.msra.mxu0 0
        %736 = vmatprep.subr.bf16.mxu0 0
        %737 = vmatpush1.bf16.msra.mxu0 0
        %738 = vmatprep.subr.bf16.mxu0 0
        %739 = vmatpush1.bf16.msra.mxu0 0
        %740 = vmatprep.subr.bf16.mxu0 0
        %741 = vmatpush1.bf16.msra.mxu0 0
        %742 = vmatprep.subr.bf16.mxu0 0
        %743 = vmatpush1.bf16.msra.mxu0 0
        %744 = vmatprep.subr.bf16.mxu0 0
        %745 = vmatpush1.bf16.msra.mxu0 0
        %746 = vmatprep.subr.bf16.mxu0 0
        %747 = vmatpush1.bf16.msra.mxu0 0
        %748 = vmatprep.subr.bf16.mxu0 0
        %749 = vmatpush1.bf16.msra.mxu0 0
        %750 = vmatprep.mubr.bf16.mxu0 0
        %751 = vmatmul.mubr.bf16.gmra.mrb[0].mxu0 %v676
        %v752 = vpop.f32.mrb[0].mxu0
        %v753 = vadd.f32 0.0, %v752
        %v754 = vpop.f32.mrb[0].mxu0
        %v755 = vadd.f32 0.0, %v754
        %v756 = vpop.f32.mrb[0].mxu0
        %v757 = vpop.f32.mrb[0].mxu0
        %758 = vdwg.mxu0
        %v759 = vadd.f32 %v672, %v712
        %v760 = vadd.f32 %v673, %v714
        %v761 = vadd.f32 %v674, %v753
        %v762 = vadd.f32 %v675, %v755
        %v763 = vmul.f32 %v759, 0.5
        %v764 = vtanh.pop %v763
        %v765 = vadd.f32 %v764, 1.0
        %v766 = vmul.f32 %v765, 0.5
        %v767 = vmul.f32 %v760, 0.5
        %v768 = vtanh.pop %v767
        %v769 = vadd.f32 %v768, 1.0
        %v770 = vmul.f32 %v769, 0.5
        %v771 = vtanh.pop %v761
        %v772 = vmul.f32 %v762, 0.5
        %v773 = vtanh.pop %v772
        %v774 = vadd.f32 %v773, 1.0
        %v775 = vmul.f32 %v774, 0.5
        %v776 = vmul.f32 %v770, %v667
        %v777 = vmul.f32 %v766, %v771
        %v778 = vadd.f32 %v776, %v777
        %v779 = vtanh.pop %v778
        %v780 = vmul.f32 %v775, %v779
        %s781 = sadd.s32 %s265, 2
        %v782 = vstv %s781
        %vm783 = vcmp.lt.s32.totalorder %v782, %v232
        %v784 = vsel %vm783, 1, 0
        %785 = vset.pattern.permute.xlu0 0
        %786 = vperm.xlu0 %785, %v784
        %v787 = vpop.permute.xlu0 %786
        %vm788 = vcmp.eq.s32.totalorder %v787, 1
        %v789 = vsel %vm788, %v780, %v666
        %v790 = vsel %vm788, %v778, %v667
        %v791 = vsel %vm788, %v780, 0.0
        %s792 = scalar_lea.vmem %s212, 16 [#allocation4]
        %793 = vst [vmem:[%s792] sm:$0xff] %v791
        %s794 = scalar_lea.vmem %s222, 96
        %v795 = vld [vmem:[%s794] sm:$0xff]
        %v796 = vld [vmem:[%s794 + $0x8] sm:$0xff]
        %v797 = vld [vmem:[%s794 + $0x10] sm:$0xff]
        %v798 = vld [vmem:[%s794 + $0x18] sm:$0xff]
        %v799 = vpack.c.bf16 %v789, %v789
        %800 = vmatprep.subr.bf16.mxu0 %v370
        %801 = vmatpush1.bf16.msra.mxu0 %v369
        %802 = vmatprep.subr.bf16.mxu0 %v374
        %803 = vmatpush1.bf16.msra.mxu0 %v373
        %804 = vmatprep.subr.bf16.mxu0 %v378
        %805 = vmatpush1.bf16.msra.mxu0 %v377
        %806 = vmatprep.subr.bf16.mxu0 %v382
        %807 = vmatpush1.bf16.msra.mxu0 %v381
        %808 = vmatprep.subr.bf16.mxu0 %v386
        %809 = vmatpush1.bf16.msra.mxu0 %v385
        %810 = vmatprep.subr.bf16.mxu0 %v390
        %811 = vmatpush1.bf16.msra.mxu0 %v389
        %812 = vmatprep.subr.bf16.mxu0 %v394
        %813 = vmatpush1.bf16.msra.mxu0 %v393
        %814 = vmatprep.subr.bf16.mxu0 %v398
        %815 = vmatpush1.bf16.msra.mxu0 %v397
        %816 = vmatprep.subr.bf16.mxu0 0
        %817 = vmatpush1.bf16.msra.mxu0 0
        %818 = vmatprep.subr.bf16.mxu0 0
        %819 = vmatpush1.bf16.msra.mxu0 0
        %820 = vmatprep.subr.bf16.mxu0 0
        %821 = vmatpush1.bf16.msra.mxu0 0
        %822 = vmatprep.subr.bf16.mxu0 0
        %823 = vmatpush1.bf16.msra.mxu0 0
        %824 = vmatprep.subr.bf16.mxu0 0
        %825 = vmatpush1.bf16.msra.mxu0 0
        %826 = vmatprep.subr.bf16.mxu0 0
        %827 = vmatpush1.bf16.msra.mxu0 0
        %828 = vmatprep.subr.bf16.mxu0 0
        %829 = vmatpush1.bf16.msra.mxu0 0
        %830 = vmatprep.subr.bf16.mxu0 0
        %831 = vmatpush1.bf16.msra.mxu0 0
        %832 = vmatprep.mubr.bf16.mxu0 0
        %833 = vmatmul.mubr.bf16.gmra.mrb[0].mxu0 %v799
        %v834 = vpop.f32.mrb[0].mxu0
        %v835 = vadd.f32 0.0, %v834
        %v836 = vpop.f32.mrb[0].mxu0
        %v837 = vadd.f32 0.0, %v836
        %v838 = vpop.f32.mrb[0].mxu0
        %v839 = vpop.f32.mrb[0].mxu0
        %840 = vdwg.mxu0
        %841 = vmatprep.subr.bf16.mxu0 %v372
        %842 = vmatpush1.bf16.msra.mxu0 %v371
        %843 = vmatprep.subr.bf16.mxu0 %v376
        %844 = vmatpush1.bf16.msra.mxu0 %v375
        %845 = vmatprep.subr.bf16.mxu0 %v380
        %846 = vmatpush1.bf16.msra.mxu0 %v379
        %847 = vmatprep.subr.bf16.mxu0 %v384
        %848 = vmatpush1.bf16.msra.mxu0 %v383
        %849 = vmatprep.subr.bf16.mxu0 %v388
        %850 = vmatpush1.bf16.msra.mxu0 %v387
        %851 = vmatprep.subr.bf16.mxu0 %v392
        %852 = vmatpush1.bf16.msra.mxu0 %v391
        %853 = vmatprep.subr.bf16.mxu0 %v396
        %854 = vmatpush1.bf16.msra.mxu0 %v395
        %855 = vmatprep.subr.bf16.mxu0 %v400
        %856 = vmatpush1.bf16.msra.mxu0 %v399
        %857 = vmatprep.subr.bf16.mxu0 0
        %858 = vmatpush1.bf16.msra.mxu0 0
        %859 = vmatprep.subr.bf16.mxu0 0
        %860 = vmatpush1.bf16.msra.mxu0 0
        %861 = vmatprep.subr.bf16.mxu0 0
        %862 = vmatpush1.bf16.msra.mxu0 0
        %863 = vmatprep.subr.bf16.mxu0 0
        %864 = vmatpush1.bf16.msra.mxu0 0
        %865 = vmatprep.subr.bf16.mxu0 0
        %866 = vmatpush1.bf16.msra.mxu0 0
        %867 = vmatprep.subr.bf16.mxu0 0
        %868 = vmatpush1.bf16.msra.mxu0 0
        %869 = vmatprep.subr.bf16.mxu0 0
        %870 = vmatpush1.bf16.msra.mxu0 0
        %871 = vmatprep.subr.bf16.mxu0 0
        %872 = vmatpush1.bf16.msra.mxu0 0
        %873 = vmatprep.mubr.bf16.mxu0 0
        %874 = vmatmul.mubr.bf16.gmra.mrb[0].mxu0 %v799
        %v875 = vpop.f32.mrb[0].mxu0
        %v876 = vadd.f32 0.0, %v875
        %v877 = vpop.f32.mrb[0].mxu0
        %v878 = vadd.f32 0.0, %v877
        %v879 = vpop.f32.mrb[0].mxu0
        %v880 = vpop.f32.mrb[0].mxu0
        %881 = vdwg.mxu0
        %v882 = vadd.f32 %v795, %v835
        %v883 = vadd.f32 %v796, %v837
        %v884 = vadd.f32 %v797, %v876
        %v885 = vadd.f32 %v798, %v878
        %v886 = vmul.f32 %v882, 0.5
        %v887 = vtanh.pop %v886
        %v888 = vadd.f32 %v887, 1.0
        %v889 = vmul.f32 %v888, 0.5
        %v890 = vmul.f32 %v883, 0.5
        %v891 = vtanh.pop %v890
        %v892 = vadd.f32 %v891, 1.0
        %v893 = vmul.f32 %v892, 0.5
        %v894 = vtanh.pop %v884
        %v895 = vmul.f32 %v885, 0.5
        %v896 = vtanh.pop %v895
        %v897 = vadd.f32 %v896, 1.0
        %v898 = vmul.f32 %v897, 0.5
        %v899 = vmul.f32 %v893, %v790
        %v900 = vmul.f32 %v889, %v894
        %v901 = vadd.f32 %v899, %v900
        %v902 = vtanh.pop %v901
        %v903 = vmul.f32 %v898, %v902
        %s904 = sadd.s32 %s265, 3
        %v905 = vstv %s904
        %vm906 = vcmp.lt.s32.totalorder %v905, %v232
        %v907 = vsel %vm906, 1, 0
        %908 = vset.pattern.permute.xlu0 0
        %909 = vperm.xlu0 %908, %v907
        %v910 = vpop.permute.xlu0 %909
        %vm911 = vcmp.eq.s32.totalorder %v910, 1
        %v912 = vsel %vm911, %v903, %v789
        %v913 = vsel %vm911, %v901, %v790
        %v914 = vsel %vm911, %v903, 0.0
        %s915 = scalar_lea.vmem %s212, 24 [#allocation4]
        %916 = vst [vmem:[%s915] sm:$0xff] %v914
        %917 = vst [vmem:[#allocation2] sm:$0xff] %v912
        %918 = vst [vmem:[#allocation3] sm:$0xff] %v913
        %p919 = scmp.eq.s32.totalorder %s21, 1
        // Predicated region
        $region37: #{_forward_padded.1} parent=31 // pred_check
          %p920 = pneg %p919
        $region38: #{_forward_padded.1} parent=31 // pred_check_branch
          %922 = sbr.rel (%p920) target = $region40
        $region39: #{_forward_padded.1} parent=31 // pred_region
          %923 = vst [vmem:[#allocation6] sm:$0xff] %v912
          %924 = vst [vmem:[#allocation8] sm:$0xff] %v913
        $region40: #{_forward_padded.1} parent=31 // pred_fallthru
          _
        %s925 = sand.u32 %s97, 1
        %s926 = scalar_lea.sflag [#allocation5], %s925
        %s927 = sand.u32 %s97, 1
        %s928 = smul.addr %s927, 32
        %s929 = scalar_lea.vmem [#allocation4], %s928
        // Predicated region
        $region41: #{_forward_padded.1} parent=31 // pred_check
          %p930 = pneg %p107
        $region42: #{_forward_padded.1} parent=31 // pred_check_branch
          %932 = sbr.rel (%p930) target = $region44
        $region43: #{_forward_padded.1} parent=31 // pred_region
          %s933 = smul.u32 4, %s21
          %s935 = ssub.s32 512, 512
          %936 = vsyncadd %s926, %s935
          %s937 = smul.addr %s933, 128
          %s938 = scalar_lea.hbm %s3, %s937
          %s939 = sshll.u32 %s929, 4
          %s940 = int_to_ptr.vmem [resolvable:$true] %s939
          %945 = dma.vmem_to_hbm [thread:$0]  %s940, 512, %s938, %s926, 128, 128, 8
        $region44: #{_forward_padded.1} parent=31 // pred_fallthru
          _
        // Predicated region
        $region45: #{_forward_padded.1} parent=31 // pred_check
          %p946 = pneg %p128
        $region46: #{_forward_padded.1} parent=31 // pred_check_branch
          %948 = sbr.rel (%p946) target = $region48
        $region47: #{_forward_padded.1} parent=31 // pred_region
          %s950 = ssub.s32 128, 128
          %951 = vsyncadd [#allocation7], %s950
          %s953 = sshll.u32 [#allocation6], 4
          %s954 = int_to_ptr.vmem [resolvable:$true] %s953
          %956 = dma.vmem_to_hbm [thread:$0]  %s954, 128, %s4, [#allocation7]
        $region48: #{_forward_padded.1} parent=31 // pred_fallthru
          _
        // Predicated region
        $region49: #{_forward_padded.1} parent=31 // pred_check
          %p957 = pneg %p149
        $region50: #{_forward_padded.1} parent=31 // pred_check_branch
          %959 = sbr.rel (%p957) target = $region52
        $region51: #{_forward_padded.1} parent=31 // pred_region
          %s961 = ssub.s32 128, 128
          %962 = vsyncadd [#allocation7], %s961
          %s964 = sshll.u32 [#allocation8], 4
          %s965 = int_to_ptr.vmem [resolvable:$true] %s964
          %967 = dma.vmem_to_hbm [thread:$0]  %s965, 128, %s5, [#allocation7]
        $region52: #{_forward_padded.1} parent=31 // pred_fallthru
          _
        // Predicated region
        $region53: #{_forward_padded.1} parent=31 // pred_check
          %p968 = pneg %p128
        $region54: #{_forward_padded.1} parent=31 // pred_check_branch
          %970 = sbr.rel (%p968) target = $region56
        $region55: #{_forward_padded.1} parent=31 // pred_region
          %971 = dma.done [#allocation7], 128
        $region56: #{_forward_padded.1} parent=31 // pred_fallthru
          _
        // Predicated region
        $region57: #{_forward_padded.1} parent=31 // pred_check
          %p972 = pneg %p149
        $region58: #{_forward_padded.1} parent=31 // pred_check_branch
          %974 = sbr.rel (%p972) target = $region60
        $region59: #{_forward_padded.1} parent=31 // pred_region
          %975 = dma.done [#allocation7], 128
        $region60: #{_forward_padded.1} parent=31 // pred_fallthru
          _
      $region32: #{_forward_padded.1} parent=5 // pred_fallthru
        _
      %p976 = scmp.le.s32.totalorder 2, %s16
      // Predicated region
      $region61: #{_forward_padded.1} parent=5 // pred_check
        %p977 = pneg %p976
      $region62: #{_forward_padded.1} parent=5 // pred_check_branch
        %979 = sbr.rel (%p977) target = $region64
      $region63: #{_forward_padded.1} parent=5 // pred_region
        %s980 = ssub.s32 %s16, 2
        // Predicated region
        $region65: #{_forward_padded.1} parent=63 // pred_check
          %p981 = pneg %p113
        $region66: #{_forward_padded.1} parent=63 // pred_check_branch
          %983 = sbr.rel (%p981) target = $region68
        $region67: #{_forward_padded.1} parent=63 // pred_region
          %s984 = sand.u32 %s98, 1
          %s985 = scalar_lea.sflag [#allocation5], %s984
          %s986 = sand.u32 %s98, 1
          %s987 = smul.addr %s986, 32
          %s988 = scalar_lea.vmem [#allocation4], %s987
          %989 = dma.done %s985, 512
        $region68: #{_forward_padded.1} parent=63 // pred_fallthru
          _
      $region64: #{_forward_padded.1} parent=5 // pred_fallthru
        _
    $region6: #{_forward_padded.1} parent=1 // loop_footer
      %s20 = sadd.s32 1, %s16
    $region7: #{_forward_padded.1} parent=1 // loop_footer_branch
      %15 = sbr.rel target = $region3
    $region8: #{_forward_padded.1} parent=1 // loop_exit
      _
    %990 = vsyncpa [#allocation5], 1
    %s991 = scalar_lea.sflag [#allocation5], 1
    %992 = vsyncpa %s991, 1
    %993 = vsyncpa [#allocation7], 1

</llo_original>
